<compile_context>
chip_gen: v6e
topology: v6e:2x2x1
jax: 0.10.0
libtpu: 0.0.40
codegen_flags: <defaults>
</compile_context>

<pallas_src>
import functools

import jax
import jax.numpy as jnp
from jax import lax
from jax.experimental import pallas as pl
from jax.experimental.pallas import tpu as pltpu


# ----------------------------------------------------------------------------
# Fused kernel: per batch item b
#   xh/xl:  (1, C, N)   channel-major, spatially flattened (N = H*W)
#   w1*:    (2C, C)     1x1-conv weight        b1*/bd*: (2C, 1) biases
#   wd*:    (9, 2C, 1)  depthwise taps, t = 3*(dh+1)+(dw+1)
#   masks:  (4, 1, N)   [row(dh=-1) valid, row(dh=+1) valid,
#                        col(dw=-1) valid, col(dw=+1) valid]
#   temp:   (C, 1)      per-channel-row temperature (head value repeated)
#   hmask:  (C, C)      additive block-diagonal head mask (0 / -1e30)
#   outputs oh/ol: (1, C, N) — attention output + "+v" + input residual fused.
# ----------------------------------------------------------------------------
def _scfa_kernel(xh_ref, xl_ref,
                 w1h_ref, b1h_ref, wdh_ref, bdh_ref,
                 w1l_ref, b1l_ref, wdl_ref, bdl_ref,
                 masks_ref, temp_ref, hmask_ref,
                 oh_ref, ol_ref, *, W, C):
    N = xh_ref.shape[-1]

    rmask_top = masks_ref[0]   # (1,N): 0 where the (h-1) neighbour is outside
    rmask_bot = masks_ref[1]   # (1,N): 0 where the (h+1) neighbour is outside
    cmask_m1 = masks_ref[2]    # (1,N): 0 where the (w-1) neighbour is outside
    cmask_p1 = masks_ref[3]    # (1,N): 0 where the (w+1) neighbour is outside

    def conv(x, w1, b1, wd_ref, bd):
        # 1x1 conv: (2C,C)@(C,N) on the MXU, bias broadcast along lanes.
        y = lax.dot_general(w1, x, (((1,), (0,)), ((), ())),
                            preferred_element_type=jnp.float32) + b1   # (2C,N)
        # 3x3 depthwise conv via XLU rolls over the flat spatial axis.
        # r_dh[n] = y[n + dh*W], zeroed where the dh-neighbour row is OOB.
        r_m1 = pltpu.roll(y, W % N, 1) * rmask_top          # dh = -1
        r_p1 = pltpu.roll(y, (N - W) % N, 1) * rmask_bot    # dh = +1
        # Group taps by dw so each column mask is applied once per group.
        g_m1 = wd_ref[0] * r_m1 + wd_ref[3] * y + wd_ref[6] * r_p1   # dw = -1
        g_0 = wd_ref[1] * r_m1 + wd_ref[4] * y + wd_ref[7] * r_p1    # dw =  0
        g_p1 = wd_ref[2] * r_m1 + wd_ref[5] * y + wd_ref[8] * r_p1   # dw = +1
        return (g_0 + bd
                + pltpu.roll(g_m1, 1, 1) * cmask_m1
                + pltpu.roll(g_p1, (N - 1) % N, 1) * cmask_p1)

    xh = xh_ref[0]                                   # (C, N) — also residual
    xl = xl_ref[0]
    yh = conv(xh, w1h_ref[...], b1h_ref[...], wdh_ref, bdh_ref[...])  # (2C,N)
    yl = conv(xl, w1l_ref[...], b1l_ref[...], wdl_ref, bdl_ref[...])

    q = yh[:C]
    vh = yh[C:]
    k = yl[:C]
    vl = yl[C:]

    # torch.nn.functional.normalize(x, dim=-1) == x * rsqrt(max(sum(x^2),1e-24))
    # k is normalized pre-matmul; q-side norm and temperature fold into a single
    # per-row scale on the logits.
    eps2 = jnp.float32(1e-24)
    inv_k = lax.rsqrt(jnp.maximum(jnp.sum(k * k, axis=-1, keepdims=True), eps2))
    kn = k * inv_k
    row_scale = (lax.rsqrt(jnp.maximum(jnp.sum(q * q, axis=-1, keepdims=True),
                                       eps2))
                 * temp_ref[...])                                      # (C,1)

    # All heads at once: (C,C) logits, contraction on last axes (no k transpose).
    g = lax.dot_general(q, kn, (((1,), (1,)), ((), ())),
                        preferred_element_type=jnp.float32)
    logits = g * row_scale + hmask_ref[...]        # additive block-diag mask
    m = jnp.max(logits, axis=-1, keepdims=True)
    p = jnp.exp(logits - m)
    attn = p * pl.reciprocal(jnp.sum(p, axis=-1, keepdims=True), approx=False)
    # TODO(synk): nn.Dropout(0.1) on attn is stochastic (training-only); it is
    # the identity in eval mode and is not applied here.

    oh_ref[0] = (jnp.dot(attn, vh, preferred_element_type=jnp.float32)
                 + vh + xh)
    ol_ref[0] = (jnp.dot(attn, vl, preferred_element_type=jnp.float32)
                 + vl + xl)


def _scfa_fused(xh, xl, w1h, b1h, wdh, bdh, w1l, b1l, wdl, bdl,
                masks, temp_rows, hmask_add, W):
    """xh/xl: (B, C, N). Returns (hsi_out, lidar_out), each (B, C, N)."""
    B, C, N = xh.shape
    C2 = 2 * C
    kernel = functools.partial(_scfa_kernel, W=W, C=C)
    x_spec = pl.BlockSpec((1, C, N), lambda b: (b, 0, 0))
    w1_spec = pl.BlockSpec((C2, C), lambda b: (0, 0))
    bias_spec = pl.BlockSpec((C2, 1), lambda b: (0, 0))
    wd_spec = pl.BlockSpec((9, C2, 1), lambda b: (0, 0, 0))
    mask_spec = pl.BlockSpec((4, 1, N), lambda b: (0, 0, 0))
    temp_spec = pl.BlockSpec((C, 1), lambda b: (0, 0))
    hmask_spec = pl.BlockSpec((C, C), lambda b: (0, 0))
    out_spec = pl.BlockSpec((1, C, N), lambda b: (b, 0, 0))
    out_sd = jax.ShapeDtypeStruct((B, C, N), jnp.float32)
    return pl.pallas_call(
        kernel,
        out_shape=(out_sd, out_sd),
        grid_spec=pltpu.PrefetchScalarGridSpec(
            num_scalar_prefetch=0,
            grid=(B,),
            in_specs=[x_spec, x_spec,
                      w1_spec, bias_spec, wd_spec, bias_spec,
                      w1_spec, bias_spec, wd_spec, bias_spec,
                      mask_spec, temp_spec, hmask_spec],
            out_specs=(out_spec, out_spec),
        ),
        compiler_params=pltpu.CompilerParams(
            dimension_semantics=("parallel",),
            vmem_limit_bytes=48 * 1024 * 1024),
    )(xh, xl, w1h, b1h, wdh, bdh, w1l, b1l, wdl, bdl,
      masks, temp_rows, hmask_add)


# ----------------------------------------------------------------------------
# Parameter init + forward wrapper (only free reshapes + tiny constant prep).
# ----------------------------------------------------------------------------
def init_params(key, dim, num_heads):
    ks = jax.random.split(key, 8)
    s = 0.1
    c2 = 2 * dim
    return {
        "hsi_w1": jax.random.normal(ks[0], (c2, dim), jnp.float32) * s,
        "hsi_b1": jax.random.normal(ks[1], (c2,), jnp.float32) * s,
        "hsi_wd": jax.random.normal(ks[2], (c2, 3, 3), jnp.float32) * s,
        "hsi_bd": jax.random.normal(ks[3], (c2,), jnp.float32) * s,
        "lidar_w1": jax.random.normal(ks[4], (c2, dim), jnp.float32) * s,
        "lidar_b1": jax.random.normal(ks[5], (c2,), jnp.float32) * s,
        "lidar_wd": jax.random.normal(ks[6], (c2, 3, 3), jnp.float32) * s,
        "lidar_bd": jax.random.normal(ks[7], (c2,), jnp.float32) * s,
        "temperature": jnp.ones((num_heads,), jnp.float32),  # nn.Parameter ones
    }


@functools.partial(jax.jit, static_argnames=("num_heads",))
def scfa_forward(hsi, lidar, params, *, num_heads):
    """hsi, lidar: NCHW (b, c, h, w). Returns (hsi_out, lidar_out) in NCHW."""
    b, c, H, W = hsi.shape
    ch = c // num_heads
    N = H * W
    c2 = 2 * c

    # channel-major flattened views — free reshapes, no transposes.
    xh = hsi.reshape(b, c, N)
    xl = lidar.reshape(b, c, N)

    def prep_dw(wd):  # (2c,3,3) -> (9, 2c, 1), tap t = 3*(dh+1)+(dw+1)
        return jnp.transpose(wd, (1, 2, 0)).reshape(9, c2)[..., None]

    # boundary masks for the rolled 3x3 taps (constant-folded by XLA).
    n_idx = jnp.arange(N)
    cols = n_idx % W
    masks = jnp.stack([
        (n_idx >= W),        # row valid for dh = -1
        (n_idx < N - W),     # row valid for dh = +1
        (cols >= 1),         # col valid for dw = -1
        (cols <= W - 2),     # col valid for dw = +1
    ]).astype(jnp.float32).reshape(4, 1, N)

    head_id = jnp.arange(c) // ch
    hmask_add = jnp.where(head_id[:, None] == head_id[None, :],
                          0.0, -1e30).astype(jnp.float32)
    temp_rows = jnp.repeat(params["temperature"], ch).reshape(c, 1)

    oh, ol = _scfa_fused(
        xh, xl,
        params["hsi_w1"], params["hsi_b1"].reshape(c2, 1),
        prep_dw(params["hsi_wd"]), params["hsi_bd"].reshape(c2, 1),
        params["lidar_w1"], params["lidar_b1"].reshape(c2, 1),
        prep_dw(params["lidar_wd"]), params["lidar_bd"].reshape(c2, 1),
        masks, temp_rows, hmask_add, W)
    return oh.reshape(b, c, H, W), ol.reshape(b, c, H, W)


# ----------------------------------------------------------------------------
# Pure-JAX reference (for verification).
# ----------------------------------------------------------------------------
def ref_forward(hsi, lidar, params, num_heads):
    b, c, H, W = hsi.shape
    ch = c // num_heads
    c2 = 2 * c

    def conv_block(x, w1, b1, wd, bd):
        y = jnp.einsum("oc,bchw->bohw", w1, x) + b1[None, :, None, None]
        y = lax.conv_general_dilated(
            y, wd[:, None, :, :],
            window_strides=(1, 1), padding=((1, 1), (1, 1)),
            dimension_numbers=("NCHW", "OIHW", "NCHW"),
            feature_group_count=c2) + bd[None, :, None, None]
        return y

    hsi_qv = conv_block(hsi, params["hsi_w1"], params["hsi_b1"],
                        params["hsi_wd"], params["hsi_bd"])
    lidar_kv = conv_block(lidar, params["lidar_w1"], params["lidar_b1"],
                          params["lidar_wd"], params["lidar_bd"])

    def to_heads(x):  # (b, c, h, w) -> (b, head, c_head, h*w)
        return x.reshape(b, num_heads, ch, H * W)

    q = to_heads(hsi_qv[:, :c])
    k = to_heads(lidar_kv[:, :c])
    vh = to_heads(hsi_qv[:, c:])
    vl = to_heads(lidar_kv[:, c:])

    eps = 1e-12
    qn = q / jnp.maximum(jnp.linalg.norm(q, axis=-1, keepdims=True), eps)
    kn = k / jnp.maximum(jnp.linalg.norm(k, axis=-1, keepdims=True), eps)
    attn = jnp.einsum("bhcn,bhdn->bhcd", qn, kn)
    attn = attn * params["temperature"].reshape(1, num_heads, 1, 1)
    attn = jax.nn.softmax(attn, axis=-1)
    oh = jnp.einsum("bhcd,bhdn->bhcn", attn, vh) + vh
    ol = jnp.einsum("bhcd,bhdn->bhcn", attn, vl) + vl
    return oh.reshape(b, c, H, W) + hsi, ol.reshape(b, c, H, W) + lidar


if __name__ == "__main__":
    # N = H*W = 256: lane-dense blocks (multiple of 128); C = 8 sublane-aligned.
    B, DIM, HEADS, H, W = 2, 8, 2, 16, 16

    key = jax.random.PRNGKey(0)
    k_hsi, k_lidar, k_params = jax.random.split(key, 3)
    hsi = jax.random.normal(k_hsi, (B, DIM, H, W), jnp.float32)
    lidar = jax.random.normal(k_lidar, (B, DIM, H, W), jnp.float32)
    params = init_params(k_params, DIM, HEADS)

    hsi_out, lidar_out = scfa_forward(hsi, lidar, params, num_heads=HEADS)
    jax.block_until_ready((hsi_out, lidar_out))

    hsi_ref, lidar_ref = ref_forward(hsi, lidar, params, HEADS)
    assert jnp.allclose(hsi_out, hsi_ref, atol=2e-3, rtol=2e-3), "hsi mismatch"
    assert jnp.allclose(lidar_out, lidar_ref, atol=2e-3, rtol=2e-3), "lidar mismatch"

    print("KERNEL_OK")
</pallas_src>

<mosaic_0001>
module attributes {stable_mosaic.version = 11 : i64} {
  func.func @_scfa_kernel(%arg0: i32, %arg1: memref<1x8x256xf32, #tpu.memory_space<vmem>>, %arg2: memref<1x8x256xf32, #tpu.memory_space<vmem>>, %arg3: memref<16x8xf32, #tpu.memory_space<vmem>>, %arg4: memref<16x1xf32, #tpu.memory_space<vmem>>, %arg5: memref<9x16x1xf32, #tpu.memory_space<vmem>>, %arg6: memref<16x1xf32, #tpu.memory_space<vmem>>, %arg7: memref<16x8xf32, #tpu.memory_space<vmem>>, %arg8: memref<16x1xf32, #tpu.memory_space<vmem>>, %arg9: memref<9x16x1xf32, #tpu.memory_space<vmem>>, %arg10: memref<16x1xf32, #tpu.memory_space<vmem>>, %arg11: memref<4x1x256xf32, #tpu.memory_space<vmem>>, %arg12: memref<8x1xf32, #tpu.memory_space<vmem>>, %arg13: memref<8x8xf32, #tpu.memory_space<vmem>>, %arg14: memref<1x8x256xf32, #tpu.memory_space<vmem>>, %arg15: memref<1x8x256xf32, #tpu.memory_space<vmem>>) attributes {dimension_semantics = [#tpu.dimension_semantics<parallel>], iteration_bounds = array<i64: 2>, scalar_prefetch = 0 : i64, scratch_operands = 0 : i64, tpu.core_type = #tpu.core_type<tc>, window_params = [{transform_indices = @transform_0, window_bounds = array<i64: 1, 8, 256>}, {transform_indices = @transform_1, window_bounds = array<i64: 1, 8, 256>}, {pipeline_mode = #tpu.pipeline_mode<synchronous>, transform_indices = @transform_2, window_bounds = array<i64: 16, 8>}, {pipeline_mode = #tpu.pipeline_mode<synchronous>, transform_indices = @transform_3, window_bounds = array<i64: 16, 1>}, {pipeline_mode = #tpu.pipeline_mode<synchronous>, transform_indices = @transform_4, window_bounds = array<i64: 9, 16, 1>}, {pipeline_mode = #tpu.pipeline_mode<synchronous>, transform_indices = @transform_5, window_bounds = array<i64: 16, 1>}, {pipeline_mode = #tpu.pipeline_mode<synchronous>, transform_indices = @transform_6, window_bounds = array<i64: 16, 8>}, {pipeline_mode = #tpu.pipeline_mode<synchronous>, transform_indices = @transform_7, window_bounds = array<i64: 16, 1>}, {pipeline_mode = #tpu.pipeline_mode<synchronous>, transform_indices = @transform_8, window_bounds = array<i64: 9, 16, 1>}, {pipeline_mode = #tpu.pipeline_mode<synchronous>, transform_indices = @transform_9, window_bounds = array<i64: 16, 1>}, {pipeline_mode = #tpu.pipeline_mode<synchronous>, transform_indices = @transform_10, window_bounds = array<i64: 4, 1, 256>}, {pipeline_mode = #tpu.pipeline_mode<synchronous>, transform_indices = @transform_11, window_bounds = array<i64: 8, 1>}, {pipeline_mode = #tpu.pipeline_mode<synchronous>, transform_indices = @transform_12, window_bounds = array<i64: 8, 8>}, {transform_indices = @transform_13, window_bounds = array<i64: 1, 8, 256>}, {transform_indices = @transform_14, window_bounds = array<i64: 1, 8, 256>}]} {
    %c0 = arith.constant 0 : index
    %c0_0 = arith.constant 0 : index
    %c0_1 = arith.constant 0 : index
    %0 = vector.load %arg11[%c0, %c0_0, %c0_1] : memref<4x1x256xf32, #tpu.memory_space<vmem>>, vector<1x1x256xf32>
    %1 = vector.shape_cast %0 : vector<1x1x256xf32> to vector<1x256xf32>
    %c1 = arith.constant 1 : index
    %c0_2 = arith.constant 0 : index
    %c0_3 = arith.constant 0 : index
    %2 = vector.load %arg11[%c1, %c0_2, %c0_3] : memref<4x1x256xf32, #tpu.memory_space<vmem>>, vector<1x1x256xf32>
    %3 = vector.shape_cast %2 : vector<1x1x256xf32> to vector<1x256xf32>
    %c2 = arith.constant 2 : index
    %c0_4 = arith.constant 0 : index
    %c0_5 = arith.constant 0 : index
    %4 = vector.load %arg11[%c2, %c0_4, %c0_5] : memref<4x1x256xf32, #tpu.memory_space<vmem>>, vector<1x1x256xf32>
    %5 = vector.shape_cast %4 : vector<1x1x256xf32> to vector<1x256xf32>
    %c3 = arith.constant 3 : index
    %c0_6 = arith.constant 0 : index
    %c0_7 = arith.constant 0 : index
    %6 = vector.load %arg11[%c3, %c0_6, %c0_7] : memref<4x1x256xf32, #tpu.memory_space<vmem>>, vector<1x1x256xf32>
    %7 = vector.shape_cast %6 : vector<1x1x256xf32> to vector<1x256xf32>
    %c0_8 = arith.constant 0 : index
    %c0_9 = arith.constant 0 : index
    %c0_10 = arith.constant 0 : index
    %8 = vector.load %arg1[%c0_8, %c0_9, %c0_10] : memref<1x8x256xf32, #tpu.memory_space<vmem>>, vector<1x8x256xf32>
    %9 = vector.shape_cast %8 : vector<1x8x256xf32> to vector<8x256xf32>
    %c0_11 = arith.constant 0 : index
    %c0_12 = arith.constant 0 : index
    %c0_13 = arith.constant 0 : index
    %10 = vector.load %arg2[%c0_11, %c0_12, %c0_13] : memref<1x8x256xf32, #tpu.memory_space<vmem>>, vector<1x8x256xf32>
    %11 = vector.shape_cast %10 : vector<1x8x256xf32> to vector<8x256xf32>
    %c0_14 = arith.constant 0 : index
    %c0_15 = arith.constant 0 : index
    %12 = vector.load %arg3[%c0_14, %c0_15] : memref<16x8xf32, #tpu.memory_space<vmem>>, vector<16x8xf32>
    %c0_16 = arith.constant 0 : index
    %c0_17 = arith.constant 0 : index
    %13 = vector.load %arg4[%c0_16, %c0_17] : memref<16x1xf32, #tpu.memory_space<vmem>>, vector<16x1xf32>
    %c0_18 = arith.constant 0 : index
    %c0_19 = arith.constant 0 : index
    %14 = vector.load %arg6[%c0_18, %c0_19] : memref<16x1xf32, #tpu.memory_space<vmem>>, vector<16x1xf32>
    %cst = arith.constant dense<0.000000e+00> : vector<16x256xf32>
    %15 = tpu.matmul %12, %9, %cst {dimension_numbers = #tpu.dot_dimension_numbers<[1], [0], [0], [1], [0, 0, 1, 1], [], []>} : vector<16x8xf32>, vector<8x256xf32>, vector<16x256xf32> -> vector<16x256xf32>
    %16 = vector.broadcast %13 : vector<16x1xf32> to vector<16x256xf32>
    %17 = arith.addf %15, %16 : vector<16x256xf32>
    %c16_i32 = arith.constant 16 : i32
    %18 = tpu.dynamic_rotate %17 by %c16_i32 dim 1 : vector<16x256xf32>, i32 -> vector<16x256xf32>
    %19 = vector.broadcast %1 : vector<1x256xf32> to vector<16x256xf32>
    %20 = arith.mulf %18, %19 : vector<16x256xf32>
    %c240_i32 = arith.constant 240 : i32
    %21 = tpu.dynamic_rotate %17 by %c240_i32 dim 1 : vector<16x256xf32>, i32 -> vector<16x256xf32>
    %22 = vector.broadcast %3 : vector<1x256xf32> to vector<16x256xf32>
    %23 = arith.mulf %21, %22 : vector<16x256xf32>
    %c0_20 = arith.constant 0 : index
    %c0_21 = arith.constant 0 : index
    %c0_22 = arith.constant 0 : index
    %24 = vector.load %arg5[%c0_20, %c0_21, %c0_22] : memref<9x16x1xf32, #tpu.memory_space<vmem>>, vector<1x16x1xf32>
    %25 = vector.shape_cast %24 : vector<1x16x1xf32> to vector<16x1xf32>
    %26 = vector.broadcast %25 : vector<16x1xf32> to vector<16x256xf32>
    %27 = arith.mulf %26, %20 : vector<16x256xf32>
    %c3_23 = arith.constant 3 : index
    %c0_24 = arith.constant 0 : index
    %c0_25 = arith.constant 0 : index
    %28 = vector.load %arg5[%c3_23, %c0_24, %c0_25] : memref<9x16x1xf32, #tpu.memory_space<vmem>>, vector<1x16x1xf32>
    %29 = vector.shape_cast %28 : vector<1x16x1xf32> to vector<16x1xf32>
    %30 = vector.broadcast %29 : vector<16x1xf32> to vector<16x256xf32>
    %31 = arith.mulf %30, %17 : vector<16x256xf32>
    %32 = arith.addf %27, %31 : vector<16x256xf32>
    %c6 = arith.constant 6 : index
    %c0_26 = arith.constant 0 : index
    %c0_27 = arith.constant 0 : index
    %33 = vector.load %arg5[%c6, %c0_26, %c0_27] : memref<9x16x1xf32, #tpu.memory_space<vmem>>, vector<1x16x1xf32>
    %34 = vector.shape_cast %33 : vector<1x16x1xf32> to vector<16x1xf32>
    %35 = vector.broadcast %34 : vector<16x1xf32> to vector<16x256xf32>
    %36 = arith.mulf %35, %23 : vector<16x256xf32>
    %37 = arith.addf %32, %36 : vector<16x256xf32>
    %c1_28 = arith.constant 1 : index
    %c0_29 = arith.constant 0 : index
    %c0_30 = arith.constant 0 : index
    %38 = vector.load %arg5[%c1_28, %c0_29, %c0_30] : memref<9x16x1xf32, #tpu.memory_space<vmem>>, vector<1x16x1xf32>
    %39 = vector.shape_cast %38 : vector<1x16x1xf32> to vector<16x1xf32>
    %40 = vector.broadcast %39 : vector<16x1xf32> to vector<16x256xf32>
    %41 = arith.mulf %40, %20 : vector<16x256xf32>
    %c4 = arith.constant 4 : index
    %c0_31 = arith.constant 0 : index
    %c0_32 = arith.constant 0 : index
    %42 = vector.load %arg5[%c4, %c0_31, %c0_32] : memref<9x16x1xf32, #tpu.memory_space<vmem>>, vector<1x16x1xf32>
    %43 = vector.shape_cast %42 : vector<1x16x1xf32> to vector<16x1xf32>
    %44 = vector.broadcast %43 : vector<16x1xf32> to vector<16x256xf32>
    %45 = arith.mulf %44, %17 : vector<16x256xf32>
    %46 = arith.addf %41, %45 : vector<16x256xf32>
    %c7 = arith.constant 7 : index
    %c0_33 = arith.constant 0 : index
    %c0_34 = arith.constant 0 : index
    %47 = vector.load %arg5[%c7, %c0_33, %c0_34] : memref<9x16x1xf32, #tpu.memory_space<vmem>>, vector<1x16x1xf32>
    %48 = vector.shape_cast %47 : vector<1x16x1xf32> to vector<16x1xf32>
    %49 = vector.broadcast %48 : vector<16x1xf32> to vector<16x256xf32>
    %50 = arith.mulf %49, %23 : vector<16x256xf32>
    %51 = arith.addf %46, %50 : vector<16x256xf32>
    %c2_35 = arith.constant 2 : index
    %c0_36 = arith.constant 0 : index
    %c0_37 = arith.constant 0 : index
    %52 = vector.load %arg5[%c2_35, %c0_36, %c0_37] : memref<9x16x1xf32, #tpu.memory_space<vmem>>, vector<1x16x1xf32>
    %53 = vector.shape_cast %52 : vector<1x16x1xf32> to vector<16x1xf32>
    %54 = vector.broadcast %53 : vector<16x1xf32> to vector<16x256xf32>
    %55 = arith.mulf %54, %20 : vector<16x256xf32>
    %c5 = arith.constant 5 : index
    %c0_38 = arith.constant 0 : index
    %c0_39 = arith.constant 0 : index
    %56 = vector.load %arg5[%c5, %c0_38, %c0_39] : memref<9x16x1xf32, #tpu.memory_space<vmem>>, vector<1x16x1xf32>
    %57 = vector.shape_cast %56 : vector<1x16x1xf32> to vector<16x1xf32>
    %58 = vector.broadcast %57 : vector<16x1xf32> to vector<16x256xf32>
    %59 = arith.mulf %58, %17 : vector<16x256xf32>
    %60 = arith.addf %55, %59 : vector<16x256xf32>
    %c8 = arith.constant 8 : index
    %c0_40 = arith.constant 0 : index
    %c0_41 = arith.constant 0 : index
    %61 = vector.load %arg5[%c8, %c0_40, %c0_41] : memref<9x16x1xf32, #tpu.memory_space<vmem>>, vector<1x16x1xf32>
    %62 = vector.shape_cast %61 : vector<1x16x1xf32> to vector<16x1xf32>
    %63 = vector.broadcast %62 : vector<16x1xf32> to vector<16x256xf32>
    %64 = arith.mulf %63, %23 : vector<16x256xf32>
    %65 = arith.addf %60, %64 : vector<16x256xf32>
    %66 = vector.broadcast %14 : vector<16x1xf32> to vector<16x256xf32>
    %67 = arith.addf %51, %66 : vector<16x256xf32>
    %c1_i32 = arith.constant 1 : i32
    %68 = tpu.dynamic_rotate %37 by %c1_i32 dim 1 : vector<16x256xf32>, i32 -> vector<16x256xf32>
    %69 = vector.broadcast %5 : vector<1x256xf32> to vector<16x256xf32>
    %70 = arith.mulf %68, %69 : vector<16x256xf32>
    %71 = arith.addf %67, %70 : vector<16x256xf32>
    %c255_i32 = arith.constant 255 : i32
    %72 = tpu.dynamic_rotate %65 by %c255_i32 dim 1 : vector<16x256xf32>, i32 -> vector<16x256xf32>
    %73 = vector.broadcast %7 : vector<1x256xf32> to vector<16x256xf32>
    %74 = arith.mulf %72, %73 : vector<16x256xf32>
    %75 = arith.addf %71, %74 : vector<16x256xf32>
    %c0_42 = arith.constant 0 : index
    %c0_43 = arith.constant 0 : index
    %76 = vector.load %arg7[%c0_42, %c0_43] : memref<16x8xf32, #tpu.memory_space<vmem>>, vector<16x8xf32>
    %c0_44 = arith.constant 0 : index
    %c0_45 = arith.constant 0 : index
    %77 = vector.load %arg8[%c0_44, %c0_45] : memref<16x1xf32, #tpu.memory_space<vmem>>, vector<16x1xf32>
    %c0_46 = arith.constant 0 : index
    %c0_47 = arith.constant 0 : index
    %78 = vector.load %arg10[%c0_46, %c0_47] : memref<16x1xf32, #tpu.memory_space<vmem>>, vector<16x1xf32>
    %cst_48 = arith.constant dense<0.000000e+00> : vector<16x256xf32>
    %79 = tpu.matmul %76, %11, %cst_48 {dimension_numbers = #tpu.dot_dimension_numbers<[1], [0], [0], [1], [0, 0, 1, 1], [], []>} : vector<16x8xf32>, vector<8x256xf32>, vector<16x256xf32> -> vector<16x256xf32>
    %80 = vector.broadcast %77 : vector<16x1xf32> to vector<16x256xf32>
    %81 = arith.addf %79, %80 : vector<16x256xf32>
    %c16_i32_49 = arith.constant 16 : i32
    %82 = tpu.dynamic_rotate %81 by %c16_i32_49 dim 1 : vector<16x256xf32>, i32 -> vector<16x256xf32>
    %83 = vector.broadcast %1 : vector<1x256xf32> to vector<16x256xf32>
    %84 = arith.mulf %82, %83 : vector<16x256xf32>
    %c240_i32_50 = arith.constant 240 : i32
    %85 = tpu.dynamic_rotate %81 by %c240_i32_50 dim 1 : vector<16x256xf32>, i32 -> vector<16x256xf32>
    %86 = vector.broadcast %3 : vector<1x256xf32> to vector<16x256xf32>
    %87 = arith.mulf %85, %86 : vector<16x256xf32>
    %c0_51 = arith.constant 0 : index
    %c0_52 = arith.constant 0 : index
    %c0_53 = arith.constant 0 : index
    %88 = vector.load %arg9[%c0_51, %c0_52, %c0_53] : memref<9x16x1xf32, #tpu.memory_space<vmem>>, vector<1x16x1xf32>
    %89 = vector.shape_cast %88 : vector<1x16x1xf32> to vector<16x1xf32>
    %90 = vector.broadcast %89 : vector<16x1xf32> to vector<16x256xf32>
    %91 = arith.mulf %90, %84 : vector<16x256xf32>
    %c3_54 = arith.constant 3 : index
    %c0_55 = arith.constant 0 : index
    %c0_56 = arith.constant 0 : index
    %92 = vector.load %arg9[%c3_54, %c0_55, %c0_56] : memref<9x16x1xf32, #tpu.memory_space<vmem>>, vector<1x16x1xf32>
    %93 = vector.shape_cast %92 : vector<1x16x1xf32> to vector<16x1xf32>
    %94 = vector.broadcast %93 : vector<16x1xf32> to vector<16x256xf32>
    %95 = arith.mulf %94, %81 : vector<16x256xf32>
    %96 = arith.addf %91, %95 : vector<16x256xf32>
    %c6_57 = arith.constant 6 : index
    %c0_58 = arith.constant 0 : index
    %c0_59 = arith.constant 0 : index
    %97 = vector.load %arg9[%c6_57, %c0_58, %c0_59] : memref<9x16x1xf32, #tpu.memory_space<vmem>>, vector<1x16x1xf32>
    %98 = vector.shape_cast %97 : vector<1x16x1xf32> to vector<16x1xf32>
    %99 = vector.broadcast %98 : vector<16x1xf32> to vector<16x256xf32>
    %100 = arith.mulf %99, %87 : vector<16x256xf32>
    %101 = arith.addf %96, %100 : vector<16x256xf32>
    %c1_60 = arith.constant 1 : index
    %c0_61 = arith.constant 0 : index
    %c0_62 = arith.constant 0 : index
    %102 = vector.load %arg9[%c1_60, %c0_61, %c0_62] : memref<9x16x1xf32, #tpu.memory_space<vmem>>, vector<1x16x1xf32>
    %103 = vector.shape_cast %102 : vector<1x16x1xf32> to vector<16x1xf32>
    %104 = vector.broadcast %103 : vector<16x1xf32> to vector<16x256xf32>
    %105 = arith.mulf %104, %84 : vector<16x256xf32>
    %c4_63 = arith.constant 4 : index
    %c0_64 = arith.constant 0 : index
    %c0_65 = arith.constant 0 : index
    %106 = vector.load %arg9[%c4_63, %c0_64, %c0_65] : memref<9x16x1xf32, #tpu.memory_space<vmem>>, vector<1x16x1xf32>
    %107 = vector.shape_cast %106 : vector<1x16x1xf32> to vector<16x1xf32>
    %108 = vector.broadcast %107 : vector<16x1xf32> to vector<16x256xf32>
    %109 = arith.mulf %108, %81 : vector<16x256xf32>
    %110 = arith.addf %105, %109 : vector<16x256xf32>
    %c7_66 = arith.constant 7 : index
    %c0_67 = arith.constant 0 : index
    %c0_68 = arith.constant 0 : index
    %111 = vector.load %arg9[%c7_66, %c0_67, %c0_68] : memref<9x16x1xf32, #tpu.memory_space<vmem>>, vector<1x16x1xf32>
    %112 = vector.shape_cast %111 : vector<1x16x1xf32> to vector<16x1xf32>
    %113 = vector.broadcast %112 : vector<16x1xf32> to vector<16x256xf32>
    %114 = arith.mulf %113, %87 : vector<16x256xf32>
    %115 = arith.addf %110, %114 : vector<16x256xf32>
    %c2_69 = arith.constant 2 : index
    %c0_70 = arith.constant 0 : index
    %c0_71 = arith.constant 0 : index
    %116 = vector.load %arg9[%c2_69, %c0_70, %c0_71] : memref<9x16x1xf32, #tpu.memory_space<vmem>>, vector<1x16x1xf32>
    %117 = vector.shape_cast %116 : vector<1x16x1xf32> to vector<16x1xf32>
    %118 = vector.broadcast %117 : vector<16x1xf32> to vector<16x256xf32>
    %119 = arith.mulf %118, %84 : vector<16x256xf32>
    %c5_72 = arith.constant 5 : index
    %c0_73 = arith.constant 0 : index
    %c0_74 = arith.constant 0 : index
    %120 = vector.load %arg9[%c5_72, %c0_73, %c0_74] : memref<9x16x1xf32, #tpu.memory_space<vmem>>, vector<1x16x1xf32>
    %121 = vector.shape_cast %120 : vector<1x16x1xf32> to vector<16x1xf32>
    %122 = vector.broadcast %121 : vector<16x1xf32> to vector<16x256xf32>
    %123 = arith.mulf %122, %81 : vector<16x256xf32>
    %124 = arith.addf %119, %123 : vector<16x256xf32>
    %c8_75 = arith.constant 8 : index
    %c0_76 = arith.constant 0 : index
    %c0_77 = arith.constant 0 : index
    %125 = vector.load %arg9[%c8_75, %c0_76, %c0_77] : memref<9x16x1xf32, #tpu.memory_space<vmem>>, vector<1x16x1xf32>
    %126 = vector.shape_cast %125 : vector<1x16x1xf32> to vector<16x1xf32>
    %127 = vector.broadcast %126 : vector<16x1xf32> to vector<16x256xf32>
    %128 = arith.mulf %127, %87 : vector<16x256xf32>
    %129 = arith.addf %124, %128 : vector<16x256xf32>
    %130 = vector.broadcast %78 : vector<16x1xf32> to vector<16x256xf32>
    %131 = arith.addf %115, %130 : vector<16x256xf32>
    %c1_i32_78 = arith.constant 1 : i32
    %132 = tpu.dynamic_rotate %101 by %c1_i32_78 dim 1 : vector<16x256xf32>, i32 -> vector<16x256xf32>
    %133 = vector.broadcast %5 : vector<1x256xf32> to vector<16x256xf32>
    %134 = arith.mulf %132, %133 : vector<16x256xf32>
    %135 = arith.addf %131, %134 : vector<16x256xf32>
    %c255_i32_79 = arith.constant 255 : i32
    %136 = tpu.dynamic_rotate %129 by %c255_i32_79 dim 1 : vector<16x256xf32>, i32 -> vector<16x256xf32>
    %137 = vector.broadcast %7 : vector<1x256xf32> to vector<16x256xf32>
    %138 = arith.mulf %136, %137 : vector<16x256xf32>
    %139 = arith.addf %135, %138 : vector<16x256xf32>
    %140 = vector.extract_strided_slice %75 {offsets = [0, 0], sizes = [8, 256], strides = [1, 1]} : vector<16x256xf32> to vector<8x256xf32>
    %141 = vector.extract_strided_slice %75 {offsets = [8, 0], sizes = [8, 256], strides = [1, 1]} : vector<16x256xf32> to vector<8x256xf32>
    %142 = vector.extract_strided_slice %139 {offsets = [0, 0], sizes = [8, 256], strides = [1, 1]} : vector<16x256xf32> to vector<8x256xf32>
    %143 = vector.extract_strided_slice %139 {offsets = [8, 0], sizes = [8, 256], strides = [1, 1]} : vector<16x256xf32> to vector<8x256xf32>
    %144 = arith.mulf %142, %142 : vector<8x256xf32>
    %cst_80 = arith.constant dense<0.000000e+00> : vector<8xf32>
    %145 = vector.multi_reduction <add>, %144, %cst_80 [1] : vector<8x256xf32> to vector<8xf32>
    %146 = vector.shape_cast %145 : vector<8xf32> to vector<8x1xf32>
    %cst_81 = arith.constant 1.000000e-24 : f32
    %147 = vector.broadcast %cst_81 : f32 to vector<8x1xf32>
    %148 = arith.maximumf %146, %147 : vector<8x1xf32>
    %149 = math.rsqrt %148 : vector<8x1xf32>
    %150 = vector.broadcast %149 : vector<8x1xf32> to vector<8x256xf32>
    %151 = arith.mulf %142, %150 : vector<8x256xf32>
    %152 = arith.mulf %140, %140 : vector<8x256xf32>
    %cst_82 = arith.constant dense<0.000000e+00> : vector<8xf32>
    %153 = vector.multi_reduction <add>, %152, %cst_82 [1] : vector<8x256xf32> to vector<8xf32>
    %154 = vector.shape_cast %153 : vector<8xf32> to vector<8x1xf32>
    %cst_83 = arith.constant 1.000000e-24 : f32
    %155 = vector.broadcast %cst_83 : f32 to vector<8x1xf32>
    %156 = arith.maximumf %154, %155 : vector<8x1xf32>
    %157 = math.rsqrt %156 : vector<8x1xf32>
    %c0_84 = arith.constant 0 : index
    %c0_85 = arith.constant 0 : index
    %158 = vector.load %arg12[%c0_84, %c0_85] : memref<8x1xf32, #tpu.memory_space<vmem>>, vector<8x1xf32>
    %159 = arith.mulf %157, %158 : vector<8x1xf32>
    %cst_86 = arith.constant dense<0.000000e+00> : vector<8x8xf32>
    %160 = tpu.matmul %140, %151, %cst_86 {dimension_numbers = #tpu.dot_dimension_numbers<[1], [1], [0], [0], [0, 0, 1, 0], [], []>} : vector<8x256xf32>, vector<8x256xf32>, vector<8x8xf32> -> vector<8x8xf32>
    %161 = vector.broadcast %159 : vector<8x1xf32> to vector<8x8xf32>
    %162 = arith.mulf %160, %161 : vector<8x8xf32>
    %c0_87 = arith.constant 0 : index
    %c0_88 = arith.constant 0 : index
    %163 = vector.load %arg13[%c0_87, %c0_88] : memref<8x8xf32, #tpu.memory_space<vmem>>, vector<8x8xf32>
    %164 = arith.addf %162, %163 : vector<8x8xf32>
    %cst_89 = arith.constant dense<0xFF800000> : vector<8xf32>
    %165 = vector.multi_reduction <maximumf>, %164, %cst_89 [1] : vector<8x8xf32> to vector<8xf32>
    %166 = vector.shape_cast %165 : vector<8xf32> to vector<8x1xf32>
    %167 = vector.broadcast %166 : vector<8x1xf32> to vector<8x8xf32>
    %168 = arith.subf %164, %167 : vector<8x8xf32>
    %169 = math.exp %168 : vector<8x8xf32>
    %cst_90 = arith.constant dense<0.000000e+00> : vector<8xf32>
    %170 = vector.multi_reduction <add>, %169, %cst_90 [1] : vector<8x8xf32> to vector<8xf32>
    %171 = vector.shape_cast %170 : vector<8xf32> to vector<8x1xf32>
    %172 = tpu.reciprocal %171 : vector<8x1xf32> -> vector<8x1xf32>
    %173 = vector.broadcast %172 : vector<8x1xf32> to vector<8x8xf32>
    %174 = arith.mulf %169, %173 : vector<8x8xf32>
    %cst_91 = arith.constant dense<0.000000e+00> : vector<8x256xf32>
    %175 = tpu.matmul %174, %141, %cst_91 {dimension_numbers = #tpu.dot_dimension_numbers<[1], [0], [0], [1], [0, 0, 1, 1], [], []>} : vector<8x8xf32>, vector<8x256xf32>, vector<8x256xf32> -> vector<8x256xf32>
    %176 = arith.addf %175, %141 : vector<8x256xf32>
    %177 = arith.addf %176, %9 : vector<8x256xf32>
    %c0_92 = arith.constant 0 : index
    %c0_93 = arith.constant 0 : index
    %c0_94 = arith.constant 0 : index
    %178 = vector.load %arg14[%c0_92, %c0_93, %c0_94] : memref<1x8x256xf32, #tpu.memory_space<vmem>>, vector<1x8x256xf32>
    %179 = vector.shape_cast %178 : vector<1x8x256xf32> to vector<8x256xf32>
    %180 = vector.shape_cast %177 : vector<8x256xf32> to vector<1x8x256xf32>
    tpu.vector_store %arg14[%c0_92, %c0_93, %c0_94], %180 {strides = array<i32>} : memref<1x8x256xf32, #tpu.memory_space<vmem>>, vector<1x8x256xf32>,
    %cst_95 = arith.constant dense<0.000000e+00> : vector<8x256xf32>
    %181 = tpu.matmul %174, %143, %cst_95 {dimension_numbers = #tpu.dot_dimension_numbers<[1], [0], [0], [1], [0, 0, 1, 1], [], []>} : vector<8x8xf32>, vector<8x256xf32>, vector<8x256xf32> -> vector<8x256xf32>
    %182 = arith.addf %181, %143 : vector<8x256xf32>
    %183 = arith.addf %182, %11 : vector<8x256xf32>
    %c0_96 = arith.constant 0 : index
    %c0_97 = arith.constant 0 : index
    %c0_98 = arith.constant 0 : index
    %184 = vector.load %arg15[%c0_96, %c0_97, %c0_98] : memref<1x8x256xf32, #tpu.memory_space<vmem>>, vector<1x8x256xf32>
    %185 = vector.shape_cast %184 : vector<1x8x256xf32> to vector<8x256xf32>
    %186 = vector.shape_cast %183 : vector<8x256xf32> to vector<1x8x256xf32>
    tpu.vector_store %arg15[%c0_96, %c0_97, %c0_98], %186 {strides = array<i32>} : memref<1x8x256xf32, #tpu.memory_space<vmem>>, vector<1x8x256xf32>,
    return
  }
  func.func @transform_0(%arg0: i32) -> (i32, i32, i32) {
    %c0_i32 = arith.constant 0 : i32
    %c0_i32_0 = arith.constant 0 : i32
    %c0_i32_1 = arith.constant 0 : i32
    return %arg0, %c0_i32, %c0_i32_0 : i32, i32, i32
  }
  func.func @transform_1(%arg0: i32) -> (i32, i32, i32) {
    %c0_i32 = arith.constant 0 : i32
    %c0_i32_0 = arith.constant 0 : i32
    %c0_i32_1 = arith.constant 0 : i32
    return %arg0, %c0_i32, %c0_i32_0 : i32, i32, i32
  }
  func.func @transform_2(%arg0: i32) -> (i32, i32) {
    %c0_i32 = arith.constant 0 : i32
    %c0_i32_0 = arith.constant 0 : i32
    %c0_i32_1 = arith.constant 0 : i32
    return %c0_i32, %c0_i32_0 : i32, i32
  }
  func.func @transform_3(%arg0: i32) -> (i32, i32) {
    %c0_i32 = arith.constant 0 : i32
    %c0_i32_0 = arith.constant 0 : i32
    %c0_i32_1 = arith.constant 0 : i32
    return %c0_i32, %c0_i32_0 : i32, i32
  }
  func.func @transform_4(%arg0: i32) -> (i32, i32, i32) {
    %c0_i32 = arith.constant 0 : i32
    %c0_i32_0 = arith.constant 0 : i32
    %c0_i32_1 = arith.constant 0 : i32
    %c0_i32_2 = arith.constant 0 : i32
    return %c0_i32, %c0_i32_0, %c0_i32_1 : i32, i32, i32
  }
  func.func @transform_5(%arg0: i32) -> (i32, i32) {
    %c0_i32 = arith.constant 0 : i32
    %c0_i32_0 = arith.constant 0 : i32
    %c0_i32_1 = arith.constant 0 : i32
    return %c0_i32, %c0_i32_0 : i32, i32
  }
  func.func @transform_6(%arg0: i32) -> (i32, i32) {
    %c0_i32 = arith.constant 0 : i32
    %c0_i32_0 = arith.constant 0 : i32
    %c0_i32_1 = arith.constant 0 : i32
    return %c0_i32, %c0_i32_0 : i32, i32
  }
  func.func @transform_7(%arg0: i32) -> (i32, i32) {
    %c0_i32 = arith.constant 0 : i32
    %c0_i32_0 = arith.constant 0 : i32
    %c0_i32_1 = arith.constant 0 : i32
    return %c0_i32, %c0_i32_0 : i32, i32
  }
  func.func @transform_8(%arg0: i32) -> (i32, i32, i32) {
    %c0_i32 = arith.constant 0 : i32
    %c0_i32_0 = arith.constant 0 : i32
    %c0_i32_1 = arith.constant 0 : i32
    %c0_i32_2 = arith.constant 0 : i32
    return %c0_i32, %c0_i32_0, %c0_i32_1 : i32, i32, i32
  }
  func.func @transform_9(%arg0: i32) -> (i32, i32) {
    %c0_i32 = arith.constant 0 : i32
    %c0_i32_0 = arith.constant 0 : i32
    %c0_i32_1 = arith.constant 0 : i32
    return %c0_i32, %c0_i32_0 : i32, i32
  }
  func.func @transform_10(%arg0: i32) -> (i32, i32, i32) {
    %c0_i32 = arith.constant 0 : i32
    %c0_i32_0 = arith.constant 0 : i32
    %c0_i32_1 = arith.constant 0 : i32
    %c0_i32_2 = arith.constant 0 : i32
    return %c0_i32, %c0_i32_0, %c0_i32_1 : i32, i32, i32
  }
  func.func @transform_11(%arg0: i32) -> (i32, i32) {
    %c0_i32 = arith.constant 0 : i32
    %c0_i32_0 = arith.constant 0 : i32
    %c0_i32_1 = arith.constant 0 : i32
    return %c0_i32, %c0_i32_0 : i32, i32
  }
  func.func @transform_12(%arg0: i32) -> (i32, i32) {
    %c0_i32 = arith.constant 0 : i32
    %c0_i32_0 = arith.constant 0 : i32
    %c0_i32_1 = arith.constant 0 : i32
    return %c0_i32, %c0_i32_0 : i32, i32
  }
  func.func @transform_13(%arg0: i32) -> (i32, i32, i32) {
    %c0_i32 = arith.constant 0 : i32
    %c0_i32_0 = arith.constant 0 : i32
    %c0_i32_1 = arith.constant 0 : i32
    return %arg0, %c0_i32, %c0_i32_0 : i32, i32, i32
  }
  func.func @transform_14(%arg0: i32) -> (i32, i32, i32) {
    %c0_i32 = arith.constant 0 : i32
    %c0_i32_0 = arith.constant 0 : i32
    %c0_i32_1 = arith.constant 0 : i32
    return %arg0, %c0_i32, %c0_i32_0 : i32, i32, i32
  }
}

</mosaic_0001>

<llo_original>
// kernel: scfa_forward.1
$region0: #{scfa_forward.1}
  #allocation0 [shape = 'u32[]', space=smem, size = 0x4, offset = 0x4, fixed_abs, tag = 'smem constant byte address 0x4 - core index']
  #allocation1 [shape = 'u32[144,128]{1,0:T(1,128)}', space=vmem, size = 0x12000, scoped, tag = 'internal scratch']
  %s0 = inlined_call_operand.vmem [shape: f32[2,8,256], index: 0, kind: input, shape index: {}]
  %s1 = inlined_call_operand.vmem [shape: f32[2,8,256], index: 1, kind: input, shape index: {}]
  %s2 = inlined_call_operand.vmem [shape: f32[16,8], index: 2, kind: input, shape index: {}]
  %s3 = inlined_call_operand.vmem [shape: f32[16,1], index: 3, kind: input, shape index: {}]
  %s4 = inlined_call_operand.vmem [shape: f32[9,16,1], index: 4, kind: input, shape index: {}]
  %s5 = inlined_call_operand.vmem [shape: f32[16,1], index: 5, kind: input, shape index: {}]
  %s6 = inlined_call_operand.vmem [shape: f32[16,8], index: 6, kind: input, shape index: {}]
  %s7 = inlined_call_operand.vmem [shape: f32[16,1], index: 7, kind: input, shape index: {}]
  %s8 = inlined_call_operand.vmem [shape: f32[9,16,1], index: 8, kind: input, shape index: {}]
  %s9 = inlined_call_operand.vmem [shape: f32[16,1], index: 9, kind: input, shape index: {}]
  %s10 = inlined_call_operand.vmem [shape: f32[4,1,256], index: 10, kind: input, shape index: {}]
  %s11 = inlined_call_operand.vmem [shape: f32[8,1], index: 11, kind: input, shape index: {}]
  %s12 = inlined_call_operand.vmem [shape: f32[8,8], index: 12, kind: input, shape index: {}]
  %s13 = inlined_call_operand.vmem [shape: f32[2,8,256], index: 13, kind: output, shape index: {0}]
  %s14 = inlined_call_operand.vmem [shape: f32[2,8,256], index: 14, kind: output, shape index: {1}]
  %15 = xla_tuple %s13, %s14
  %s16 = sld [smem:[#allocation0]]
  $region93: #{scfa_forward.1} parent=0
    _
  %s18 = ssub.s32 1, %s16
  %s19 = scalar_select 0, %s18, %s16
  loop: start=0, step=1, limit=4
  $region2: #{scfa_forward.1} parent=0 // loop_pre_header
    _
  $region3: #{scfa_forward.1} parent=0 // loop_header
    %s21 = sphi 0, %s25
    %p22 = scmp.ge.s32.totalorder %s21, 4
    %s31 = sphi 0, %s33
    %s34 = sphi 0, %s31
    %s35 = sphi 0, %s34
    %s51 = sphi 0, %s35
    %s57 = sphi 0, %s59
    %s60 = sphi 0, %s57
    %s61 = sphi 0, %s60
    %s77 = sphi 0, %s61
    %s81 = sphi 0, %s81
    %s83 = sphi 0, %s81
    %s84 = sphi 0, %s83
    %s98 = sphi 0, %s84
    %s102 = sphi 0, %s102
    %s104 = sphi 0, %s102
    %s105 = sphi 0, %s104
    %s119 = sphi 0, %s105
    %s123 = sphi 0, %s123
    %s125 = sphi 0, %s123
    %s126 = sphi 0, %s125
    %s140 = sphi 0, %s126
    %s144 = sphi 0, %s144
    %s146 = sphi 0, %s144
    %s147 = sphi 0, %s146
    %s161 = sphi 0, %s147
    %s165 = sphi 0, %s165
    %s167 = sphi 0, %s165
    %s168 = sphi 0, %s167
    %s182 = sphi 0, %s168
    %s186 = sphi 0, %s186
    %s188 = sphi 0, %s186
    %s189 = sphi 0, %s188
    %s203 = sphi 0, %s189
    %s207 = sphi 0, %s207
    %s209 = sphi 0, %s207
    %s210 = sphi 0, %s209
    %s224 = sphi 0, %s210
    %s228 = sphi 0, %s228
    %s230 = sphi 0, %s228
    %s231 = sphi 0, %s230
    %s245 = sphi 0, %s231
    %s249 = sphi 0, %s249
    %s251 = sphi 0, %s249
    %s252 = sphi 0, %s251
    %s266 = sphi 0, %s252
    %s270 = sphi 0, %s270
    %s272 = sphi 0, %s270
    %s273 = sphi 0, %s272
    %s287 = sphi 0, %s273
    %s291 = sphi 0, %s291
    %s293 = sphi 0, %s291
    %s294 = sphi 0, %s293
    %s308 = sphi 0, %s294
    %s314 = sphi 0, %s316
    %s317 = sphi 0, %s314
    %s318 = sphi 0, %s317
    %s334 = sphi 0, %s318
    %s340 = sphi 0, %s342
    %s343 = sphi 0, %s340
    %s344 = sphi 0, %s343
    %s360 = sphi 0, %s344
  $region4: #{scfa_forward.1} parent=0 // loop_header_branch
    %24 = sbr.rel (%p22) target = $region8
  $region5: #{scfa_forward.1} parent=0 // loop_body
    %s26 = ssub.s32 %s21, 1
    %s27 = ssub.s32 %s21, 2
    %s28 = sadd.s32 %s21, 1
    %s29 = ssub.s32 %s21, %s28
    %p30 = scmp.eq.s32.totalorder %s29, 0
    %s32 = sadd.s32 %s31, 1
    %s33 = scalar_select %p30, %s31, %s32
    %p36 = pneg %p30
    %p37 = scmp.eq.s32.totalorder %s21, 1
    %p38 = por %p36, %p37
    %p39 = scmp.ne.s32.totalorder %s31, %s34
    %p40 = scmp.eq.s32.totalorder %s21, 0
    %p41 = por %p39, %p40
    %p42 = scmp.ne.s32.totalorder %s31, %s34
    %p43 = scmp.eq.s32.totalorder %s26, 1
    %p44 = por %p42, %p43
    %p45 = scmp.ne.s32.totalorder %s34, %s35
    %p46 = scmp.eq.s32.totalorder %s26, 0
    %p47 = por %p45, %p46
    %p48 = scmp.ne.s32.totalorder %s34, %s35
    %p49 = scmp.eq.s32.totalorder %s27, 1
    %p50 = por %p48, %p49
    %p52 = scmp.ne.s32.totalorder %s35, %s51
    %p53 = scmp.eq.s32.totalorder %s27, 0
    %p54 = por %p52, %p53
    %s55 = ssub.s32 %s21, %s28
    %p56 = scmp.eq.s32.totalorder %s55, 0
    %s58 = sadd.s32 %s57, 1
    %s59 = scalar_select %p56, %s57, %s58
    %p62 = pneg %p56
    %p63 = scmp.eq.s32.totalorder %s21, 1
    %p64 = por %p62, %p63
    %p65 = scmp.ne.s32.totalorder %s57, %s60
    %p66 = scmp.eq.s32.totalorder %s21, 0
    %p67 = por %p65, %p66
    %p68 = scmp.ne.s32.totalorder %s57, %s60
    %p69 = scmp.eq.s32.totalorder %s26, 1
    %p70 = por %p68, %p69
    %p71 = scmp.ne.s32.totalorder %s60, %s61
    %p72 = scmp.eq.s32.totalorder %s26, 0
    %p73 = por %p71, %p72
    %p74 = scmp.ne.s32.totalorder %s60, %s61
    %p75 = scmp.eq.s32.totalorder %s27, 1
    %p76 = por %p74, %p75
    %p78 = scmp.ne.s32.totalorder %s61, %s77
    %p79 = scmp.eq.s32.totalorder %s27, 0
    %p80 = por %p78, %p79
    %s82 = sadd.s32 %s81, 1
    %p85 = scmp.eq.s32.totalorder %s21, 1
    %p86 = scmp.ne.s32.totalorder %s81, %s83
    %p87 = scmp.eq.s32.totalorder %s21, 0
    %p88 = por %p86, %p87
    %p89 = scmp.ne.s32.totalorder %s81, %s83
    %p90 = scmp.eq.s32.totalorder %s26, 1
    %p91 = por %p89, %p90
    %p92 = scmp.ne.s32.totalorder %s83, %s84
    %p93 = scmp.eq.s32.totalorder %s26, 0
    %p94 = por %p92, %p93
    %p95 = scmp.ne.s32.totalorder %s83, %s84
    %p96 = scmp.eq.s32.totalorder %s27, 1
    %p97 = por %p95, %p96
    %p99 = scmp.ne.s32.totalorder %s84, %s98
    %p100 = scmp.eq.s32.totalorder %s27, 0
    %p101 = por %p99, %p100
    %s103 = sadd.s32 %s102, 1
    %p106 = scmp.eq.s32.totalorder %s21, 1
    %p107 = scmp.ne.s32.totalorder %s102, %s104
    %p108 = scmp.eq.s32.totalorder %s21, 0
    %p109 = por %p107, %p108
    %p110 = scmp.ne.s32.totalorder %s102, %s104
    %p111 = scmp.eq.s32.totalorder %s26, 1
    %p112 = por %p110, %p111
    %p113 = scmp.ne.s32.totalorder %s104, %s105
    %p114 = scmp.eq.s32.totalorder %s26, 0
    %p115 = por %p113, %p114
    %p116 = scmp.ne.s32.totalorder %s104, %s105
    %p117 = scmp.eq.s32.totalorder %s27, 1
    %p118 = por %p116, %p117
    %p120 = scmp.ne.s32.totalorder %s105, %s119
    %p121 = scmp.eq.s32.totalorder %s27, 0
    %p122 = por %p120, %p121
    %s124 = sadd.s32 %s123, 1
    %p127 = scmp.eq.s32.totalorder %s21, 1
    %p128 = scmp.ne.s32.totalorder %s123, %s125
    %p129 = scmp.eq.s32.totalorder %s21, 0
    %p130 = por %p128, %p129
    %p131 = scmp.ne.s32.totalorder %s123, %s125
    %p132 = scmp.eq.s32.totalorder %s26, 1
    %p133 = por %p131, %p132
    %p134 = scmp.ne.s32.totalorder %s125, %s126
    %p135 = scmp.eq.s32.totalorder %s26, 0
    %p136 = por %p134, %p135
    %p137 = scmp.ne.s32.totalorder %s125, %s126
    %p138 = scmp.eq.s32.totalorder %s27, 1
    %p139 = por %p137, %p138
    %p141 = scmp.ne.s32.totalorder %s126, %s140
    %p142 = scmp.eq.s32.totalorder %s27, 0
    %p143 = por %p141, %p142
    %s145 = sadd.s32 %s144, 1
    %p148 = scmp.eq.s32.totalorder %s21, 1
    %p149 = scmp.ne.s32.totalorder %s144, %s146
    %p150 = scmp.eq.s32.totalorder %s21, 0
    %p151 = por %p149, %p150
    %p152 = scmp.ne.s32.totalorder %s144, %s146
    %p153 = scmp.eq.s32.totalorder %s26, 1
    %p154 = por %p152, %p153
    %p155 = scmp.ne.s32.totalorder %s146, %s147
    %p156 = scmp.eq.s32.totalorder %s26, 0
    %p157 = por %p155, %p156
    %p158 = scmp.ne.s32.totalorder %s146, %s147
    %p159 = scmp.eq.s32.totalorder %s27, 1
    %p160 = por %p158, %p159
    %p162 = scmp.ne.s32.totalorder %s147, %s161
    %p163 = scmp.eq.s32.totalorder %s27, 0
    %p164 = por %p162, %p163
    %s166 = sadd.s32 %s165, 1
    %p169 = scmp.eq.s32.totalorder %s21, 1
    %p170 = scmp.ne.s32.totalorder %s165, %s167
    %p171 = scmp.eq.s32.totalorder %s21, 0
    %p172 = por %p170, %p171
    %p173 = scmp.ne.s32.totalorder %s165, %s167
    %p174 = scmp.eq.s32.totalorder %s26, 1
    %p175 = por %p173, %p174
    %p176 = scmp.ne.s32.totalorder %s167, %s168
    %p177 = scmp.eq.s32.totalorder %s26, 0
    %p178 = por %p176, %p177
    %p179 = scmp.ne.s32.totalorder %s167, %s168
    %p180 = scmp.eq.s32.totalorder %s27, 1
    %p181 = por %p179, %p180
    %p183 = scmp.ne.s32.totalorder %s168, %s182
    %p184 = scmp.eq.s32.totalorder %s27, 0
    %p185 = por %p183, %p184
    %s187 = sadd.s32 %s186, 1
    %p190 = scmp.eq.s32.totalorder %s21, 1
    %p191 = scmp.ne.s32.totalorder %s186, %s188
    %p192 = scmp.eq.s32.totalorder %s21, 0
    %p193 = por %p191, %p192
    %p194 = scmp.ne.s32.totalorder %s186, %s188
    %p195 = scmp.eq.s32.totalorder %s26, 1
    %p196 = por %p194, %p195
    %p197 = scmp.ne.s32.totalorder %s188, %s189
    %p198 = scmp.eq.s32.totalorder %s26, 0
    %p199 = por %p197, %p198
    %p200 = scmp.ne.s32.totalorder %s188, %s189
    %p201 = scmp.eq.s32.totalorder %s27, 1
    %p202 = por %p200, %p201
    %p204 = scmp.ne.s32.totalorder %s189, %s203
    %p205 = scmp.eq.s32.totalorder %s27, 0
    %p206 = por %p204, %p205
    %s208 = sadd.s32 %s207, 1
    %p211 = scmp.eq.s32.totalorder %s21, 1
    %p212 = scmp.ne.s32.totalorder %s207, %s209
    %p213 = scmp.eq.s32.totalorder %s21, 0
    %p214 = por %p212, %p213
    %p215 = scmp.ne.s32.totalorder %s207, %s209
    %p216 = scmp.eq.s32.totalorder %s26, 1
    %p217 = por %p215, %p216
    %p218 = scmp.ne.s32.totalorder %s209, %s210
    %p219 = scmp.eq.s32.totalorder %s26, 0
    %p220 = por %p218, %p219
    %p221 = scmp.ne.s32.totalorder %s209, %s210
    %p222 = scmp.eq.s32.totalorder %s27, 1
    %p223 = por %p221, %p222
    %p225 = scmp.ne.s32.totalorder %s210, %s224
    %p226 = scmp.eq.s32.totalorder %s27, 0
    %p227 = por %p225, %p226
    %s229 = sadd.s32 %s228, 1
    %p232 = scmp.eq.s32.totalorder %s21, 1
    %p233 = scmp.ne.s32.totalorder %s228, %s230
    %p234 = scmp.eq.s32.totalorder %s21, 0
    %p235 = por %p233, %p234
    %p236 = scmp.ne.s32.totalorder %s228, %s230
    %p237 = scmp.eq.s32.totalorder %s26, 1
    %p238 = por %p236, %p237
    %p239 = scmp.ne.s32.totalorder %s230, %s231
    %p240 = scmp.eq.s32.totalorder %s26, 0
    %p241 = por %p239, %p240
    %p242 = scmp.ne.s32.totalorder %s230, %s231
    %p243 = scmp.eq.s32.totalorder %s27, 1
    %p244 = por %p242, %p243
    %p246 = scmp.ne.s32.totalorder %s231, %s245
    %p247 = scmp.eq.s32.totalorder %s27, 0
    %p248 = por %p246, %p247
    %s250 = sadd.s32 %s249, 1
    %p253 = scmp.eq.s32.totalorder %s21, 1
    %p254 = scmp.ne.s32.totalorder %s249, %s251
    %p255 = scmp.eq.s32.totalorder %s21, 0
    %p256 = por %p254, %p255
    %p257 = scmp.ne.s32.totalorder %s249, %s251
    %p258 = scmp.eq.s32.totalorder %s26, 1
    %p259 = por %p257, %p258
    %p260 = scmp.ne.s32.totalorder %s251, %s252
    %p261 = scmp.eq.s32.totalorder %s26, 0
    %p262 = por %p260, %p261
    %p263 = scmp.ne.s32.totalorder %s251, %s252
    %p264 = scmp.eq.s32.totalorder %s27, 1
    %p265 = por %p263, %p264
    %p267 = scmp.ne.s32.totalorder %s252, %s266
    %p268 = scmp.eq.s32.totalorder %s27, 0
    %p269 = por %p267, %p268
    %s271 = sadd.s32 %s270, 1
    %p274 = scmp.eq.s32.totalorder %s21, 1
    %p275 = scmp.ne.s32.totalorder %s270, %s272
    %p276 = scmp.eq.s32.totalorder %s21, 0
    %p277 = por %p275, %p276
    %p278 = scmp.ne.s32.totalorder %s270, %s272
    %p279 = scmp.eq.s32.totalorder %s26, 1
    %p280 = por %p278, %p279
    %p281 = scmp.ne.s32.totalorder %s272, %s273
    %p282 = scmp.eq.s32.totalorder %s26, 0
    %p283 = por %p281, %p282
    %p284 = scmp.ne.s32.totalorder %s272, %s273
    %p285 = scmp.eq.s32.totalorder %s27, 1
    %p286 = por %p284, %p285
    %p288 = scmp.ne.s32.totalorder %s273, %s287
    %p289 = scmp.eq.s32.totalorder %s27, 0
    %p290 = por %p288, %p289
    %s292 = sadd.s32 %s291, 1
    %p295 = scmp.eq.s32.totalorder %s21, 1
    %p296 = scmp.ne.s32.totalorder %s291, %s293
    %p297 = scmp.eq.s32.totalorder %s21, 0
    %p298 = por %p296, %p297
    %p299 = scmp.ne.s32.totalorder %s291, %s293
    %p300 = scmp.eq.s32.totalorder %s26, 1
    %p301 = por %p299, %p300
    %p302 = scmp.ne.s32.totalorder %s293, %s294
    %p303 = scmp.eq.s32.totalorder %s26, 0
    %p304 = por %p302, %p303
    %p305 = scmp.ne.s32.totalorder %s293, %s294
    %p306 = scmp.eq.s32.totalorder %s27, 1
    %p307 = por %p305, %p306
    %p309 = scmp.ne.s32.totalorder %s294, %s308
    %p310 = scmp.eq.s32.totalorder %s27, 0
    %p311 = por %p309, %p310
    %s312 = ssub.s32 %s21, %s28
    %p313 = scmp.eq.s32.totalorder %s312, 0
    %s315 = sadd.s32 %s314, 1
    %s316 = scalar_select %p313, %s314, %s315
    %p319 = pneg %p313
    %p320 = scmp.eq.s32.totalorder %s21, 1
    %p321 = por %p319, %p320
    %p322 = scmp.ne.s32.totalorder %s314, %s317
    %p323 = scmp.eq.s32.totalorder %s21, 0
    %p324 = por %p322, %p323
    %p325 = scmp.ne.s32.totalorder %s314, %s317
    %p326 = scmp.eq.s32.totalorder %s26, 1
    %p327 = por %p325, %p326
    %p328 = scmp.ne.s32.totalorder %s317, %s318
    %p329 = scmp.eq.s32.totalorder %s26, 0
    %p330 = por %p328, %p329
    %p331 = scmp.ne.s32.totalorder %s317, %s318
    %p332 = scmp.eq.s32.totalorder %s27, 1
    %p333 = por %p331, %p332
    %p335 = scmp.ne.s32.totalorder %s318, %s334
    %p336 = scmp.eq.s32.totalorder %s27, 0
    %p337 = por %p335, %p336
    %s338 = ssub.s32 %s21, %s28
    %p339 = scmp.eq.s32.totalorder %s338, 0
    %s341 = sadd.s32 %s340, 1
    %s342 = scalar_select %p339, %s340, %s341
    %p345 = pneg %p339
    %p346 = scmp.eq.s32.totalorder %s21, 1
    %p347 = por %p345, %p346
    %p348 = scmp.ne.s32.totalorder %s340, %s343
    %p349 = scmp.eq.s32.totalorder %s21, 0
    %p350 = por %p348, %p349
    %p351 = scmp.ne.s32.totalorder %s340, %s343
    %p352 = scmp.eq.s32.totalorder %s26, 1
    %p353 = por %p351, %p352
    %p354 = scmp.ne.s32.totalorder %s343, %s344
    %p355 = scmp.eq.s32.totalorder %s26, 0
    %p356 = por %p354, %p355
    %p357 = scmp.ne.s32.totalorder %s343, %s344
    %p358 = scmp.eq.s32.totalorder %s27, 1
    %p359 = por %p357, %p358
    %p361 = scmp.ne.s32.totalorder %s344, %s360
    %p362 = scmp.eq.s32.totalorder %s27, 0
    %p363 = por %p361, %p362
    %p364 = scmp.le.s32.totalorder 1, %s21
    %p365 = scmp.lt.s32.totalorder %s21, 3
    %p366 = pnand %p364, %p365
    %p367 = pneg %p366
    // Predicated region
    $region9: #{scfa_forward.1} parent=5 // pred_check
      _
    $region10: #{scfa_forward.1} parent=5 // pred_check_branch
      %369 = sbr.rel (%p366) target = $region12
    $region11: #{scfa_forward.1} parent=5 // pred_region
      %s370 = ssub.s32 %s21, 1
      // Predicated region
      $region13: #{scfa_forward.1} parent=11 // pred_check
        %p371 = pneg %p94
      $region14: #{scfa_forward.1} parent=11 // pred_check_branch
        %373 = sbr.rel (%p371) target = $region16
      $region15: #{scfa_forward.1} parent=11 // pred_region
        _
      $region16: #{scfa_forward.1} parent=11 // pred_fallthru
        _
      // Predicated region
      $region17: #{scfa_forward.1} parent=11 // pred_check
        %p374 = pneg %p115
      $region18: #{scfa_forward.1} parent=11 // pred_check_branch
        %376 = sbr.rel (%p374) target = $region20
      $region19: #{scfa_forward.1} parent=11 // pred_region
        _
      $region20: #{scfa_forward.1} parent=11 // pred_fallthru
        _
      // Predicated region
      $region21: #{scfa_forward.1} parent=11 // pred_check
        %p377 = pneg %p136
      $region22: #{scfa_forward.1} parent=11 // pred_check_branch
        %379 = sbr.rel (%p377) target = $region24
      $region23: #{scfa_forward.1} parent=11 // pred_region
        _
      $region24: #{scfa_forward.1} parent=11 // pred_fallthru
        _
      // Predicated region
      $region25: #{scfa_forward.1} parent=11 // pred_check
        %p380 = pneg %p157
      $region26: #{scfa_forward.1} parent=11 // pred_check_branch
        %382 = sbr.rel (%p380) target = $region28
      $region27: #{scfa_forward.1} parent=11 // pred_region
        _
      $region28: #{scfa_forward.1} parent=11 // pred_fallthru
        _
      // Predicated region
      $region29: #{scfa_forward.1} parent=11 // pred_check
        %p383 = pneg %p178
      $region30: #{scfa_forward.1} parent=11 // pred_check_branch
        %385 = sbr.rel (%p383) target = $region32
      $region31: #{scfa_forward.1} parent=11 // pred_region
        _
      $region32: #{scfa_forward.1} parent=11 // pred_fallthru
        _
      // Predicated region
      $region33: #{scfa_forward.1} parent=11 // pred_check
        %p386 = pneg %p199
      $region34: #{scfa_forward.1} parent=11 // pred_check_branch
        %388 = sbr.rel (%p386) target = $region36
      $region35: #{scfa_forward.1} parent=11 // pred_region
        _
      $region36: #{scfa_forward.1} parent=11 // pred_fallthru
        _
      // Predicated region
      $region37: #{scfa_forward.1} parent=11 // pred_check
        %p389 = pneg %p220
      $region38: #{scfa_forward.1} parent=11 // pred_check_branch
        %391 = sbr.rel (%p389) target = $region40
      $region39: #{scfa_forward.1} parent=11 // pred_region
        _
      $region40: #{scfa_forward.1} parent=11 // pred_fallthru
        _
      // Predicated region
      $region41: #{scfa_forward.1} parent=11 // pred_check
        %p392 = pneg %p241
      $region42: #{scfa_forward.1} parent=11 // pred_check_branch
        %394 = sbr.rel (%p392) target = $region44
      $region43: #{scfa_forward.1} parent=11 // pred_region
        _
      $region44: #{scfa_forward.1} parent=11 // pred_fallthru
        _
      // Predicated region
      $region45: #{scfa_forward.1} parent=11 // pred_check
        %p395 = pneg %p262
      $region46: #{scfa_forward.1} parent=11 // pred_check_branch
        %397 = sbr.rel (%p395) target = $region48
      $region47: #{scfa_forward.1} parent=11 // pred_region
        _
      $region48: #{scfa_forward.1} parent=11 // pred_fallthru
        _
      // Predicated region
      $region49: #{scfa_forward.1} parent=11 // pred_check
        %p398 = pneg %p283
      $region50: #{scfa_forward.1} parent=11 // pred_check_branch
        %400 = sbr.rel (%p398) target = $region52
      $region51: #{scfa_forward.1} parent=11 // pred_region
        _
      $region52: #{scfa_forward.1} parent=11 // pred_fallthru
        _
      // Predicated region
      $region53: #{scfa_forward.1} parent=11 // pred_check
        %p401 = pneg %p304
      $region54: #{scfa_forward.1} parent=11 // pred_check_branch
        %403 = sbr.rel (%p401) target = $region56
      $region55: #{scfa_forward.1} parent=11 // pred_region
        _
      $region56: #{scfa_forward.1} parent=11 // pred_fallthru
        _
    $region12: #{scfa_forward.1} parent=5 // pred_fallthru
      _
    %p404 = scmp.lt.s32.totalorder %s21, 2
    // Predicated region
    $region57: #{scfa_forward.1} parent=5 // pred_check
      %p405 = pneg %p404
    $region58: #{scfa_forward.1} parent=5 // pred_check_branch
      %407 = sbr.rel (%p405) target = $region60
    $region59: #{scfa_forward.1} parent=5 // pred_region
      // Predicated region
      $region61: #{scfa_forward.1} parent=59 // pred_check
        %p408 = pneg %p41
      $region62: #{scfa_forward.1} parent=59 // pred_check_branch
        %410 = sbr.rel (%p408) target = $region64
      $region63: #{scfa_forward.1} parent=59 // pred_region
        %p411 = scmp.lt.s32.totalorder %s21, 1
        %s412 = scalar_select %p411, %s21, 1
        %s413 = smul.addr %s412, 2
        %s414 = smul.addr %s413, 8
        %s415 = scalar_lea.vmem %s0, %s414
      $region64: #{scfa_forward.1} parent=59 // pred_fallthru
        _
      // Predicated region
      $region65: #{scfa_forward.1} parent=59 // pred_check
        %p416 = pneg %p67
      $region66: #{scfa_forward.1} parent=59 // pred_check_branch
        %418 = sbr.rel (%p416) target = $region68
      $region67: #{scfa_forward.1} parent=59 // pred_region
        %p419 = scmp.lt.s32.totalorder %s21, 1
        %s420 = scalar_select %p419, %s21, 1
        %s421 = smul.addr %s420, 2
        %s422 = smul.addr %s421, 8
        %s423 = scalar_lea.vmem %s1, %s422
      $region68: #{scfa_forward.1} parent=59 // pred_fallthru
        _
    $region60: #{scfa_forward.1} parent=5 // pred_fallthru
      _
    %p424 = scmp.le.s32.totalorder 1, %s21
    %p425 = scmp.lt.s32.totalorder %s21, 3
    %p426 = pnand %p424, %p425
    %p427 = pneg %p426
    // Predicated region
    $region69: #{scfa_forward.1} parent=5 // pred_check
      _
    $region70: #{scfa_forward.1} parent=5 // pred_check_branch
      %429 = sbr.rel (%p426) target = $region72
    $region71: #{scfa_forward.1} parent=5 // pred_region
      %s430 = ssub.s32 %s21, 1
      %p431 = scmp.lt.s32.totalorder %s26, 1
      %s432 = scalar_select %p431, %s26, 1
      %s433 = smul.addr %s432, 2
      %s434 = smul.addr %s433, 8
      %s435 = scalar_lea.vmem %s0, %s434
      %p436 = pneg %p47
      %p437 = pneg %p44
      %p438 = scmp.lt.s32.totalorder %s26, 1
      %s439 = scalar_select %p438, %s26, 1
      %s440 = smul.addr %s439, 2
      %s441 = smul.addr %s440, 8
      %s442 = scalar_lea.vmem %s1, %s441
      %p443 = pneg %p73
      %p444 = pneg %p70
      %p445 = pneg %p94
      %p446 = pneg %p91
      %p447 = pneg %p115
      %p448 = pneg %p112
      %p449 = pneg %p136
      %p450 = pneg %p133
      %p451 = pneg %p157
      %p452 = pneg %p154
      %p453 = pneg %p178
      %p454 = pneg %p175
      %p455 = pneg %p199
      %p456 = pneg %p196
      %p457 = pneg %p220
      %p458 = pneg %p217
      %p459 = pneg %p241
      %p460 = pneg %p238
      %p461 = pneg %p262
      %p462 = pneg %p259
      %p463 = pneg %p283
      %p464 = pneg %p280
      %p465 = pneg %p304
      %p466 = pneg %p301
      %p467 = pneg %p330
      %p468 = pneg %p327
      %p469 = scmp.lt.s32.totalorder %s26, 1
      %s470 = scalar_select %p469, %s26, 1
      %s471 = smul.addr %s470, 2
      %s472 = smul.addr %s471, 8
      %s473 = scalar_lea.vmem %s13, %s472
      %p474 = pneg %p356
      %p475 = pneg %p353
      %p476 = scmp.lt.s32.totalorder %s26, 1
      %s477 = scalar_select %p476, %s26, 1
      %s478 = smul.addr %s477, 2
      %s479 = smul.addr %s478, 8
      %s480 = scalar_lea.vmem %s14, %s479
      %p481 = scmp.lt.s32.totalorder %s26, 1
      %s482 = scalar_select %p481, %s26, 1
      %s483 = smul.addr %s482, 2
      %s484 = smul.addr %s483, 8
      %s485 = scalar_lea.vmem %s0, %s484
      %p486 = scmp.lt.s32.totalorder %s26, 1
      %s487 = scalar_select %p486, %s26, 1
      %s488 = smul.addr %s487, 2
      %s489 = smul.addr %s488, 8
      %s490 = scalar_lea.vmem %s1, %s489
      %p491 = scmp.lt.s32.totalorder %s26, 1
      %s492 = scalar_select %p491, %s26, 1
      %s493 = smul.addr %s492, 2
      %s494 = smul.addr %s493, 8
      %s495 = scalar_lea.vmem %s13, %s494
      %p496 = scmp.lt.s32.totalorder %s26, 1
      %s497 = scalar_select %p496, %s26, 1
      %s498 = smul.addr %s497, 2
      %s499 = smul.addr %s498, 8
      %s500 = scalar_lea.vmem %s14, %s499
      %v501 = vld [vmem:[%s10] sm:$0x3]
      %s502 = scalar_lea.vmem %s10, 2
      %v503 = vld [vmem:[%s502] sm:$0x3]
      %s504 = scalar_lea.vmem %s10, 4
      %v505 = vld [vmem:[%s504] sm:$0x3]
      %s506 = scalar_lea.vmem %s10, 6
      %v507 = vld [vmem:[%s506] sm:$0x3]
      %v508 = vld [vmem:[%s485] sm:$0xff]
      %v509 = vld [vmem:[%s485 + $0x8] sm:$0xff]
      %v510 = vld [vmem:[%s490] sm:$0xff]
      %v511 = vld [vmem:[%s490 + $0x8] sm:$0xff]
      %v512 = vld [vmem:[%s2] sm:$0xff]
      %v513 = vld [vmem:[%s2 + $0x8] sm:$0xff]
      %v514 = vld [vmem:[%s3] sm:$0xff]
      %v515 = vld [vmem:[%s3 + $0x8] sm:$0xff]
      %v516 = vld [vmem:[%s5] sm:$0xff]
      %v517 = vld [vmem:[%s5 + $0x8] sm:$0xff]
      %519 = vset.pattern.permute.xlu0 0
      %520 = vperm.xlu0 %519, %v514
      %v521 = vpop.permute.xlu0 %520
      %524 = vset.pattern.permute.xlu0 0
      %525 = vperm.xlu0 %524, %v515
      %v526 = vpop.permute.xlu0 %525
      %vm528 = vcmask 64512
      %v530 = vsel %vm528, %v512, 0
      %v533 = vsel %vm528, %v513, 0
      %535 = vmatprep.subr.mxu0 0.0
      %536 = vmatpush1.msra.mxu0 0.0
      %537 = vmatprep.subr.mxu0 0.0
      %538 = vmatpush1.msra.mxu0 0.0
      %539 = vmatprep.subr.mxu0 0.0
      %540 = vmatpush1.msra.mxu0 0.0
      %541 = vmatprep.subr.mxu0 0.0
      %542 = vmatpush1.msra.mxu0 0.0
      %543 = vmatprep.subr.mxu0 0.0
      %544 = vmatpush1.msra.mxu0 0.0
      %545 = vmatprep.subr.mxu0 0.0
      %546 = vmatpush1.msra.mxu0 0.0
      %547 = vmatprep.subr.mxu0 0.0
      %548 = vmatpush1.msra.mxu0 0.0
      %549 = vmatprep.subr.mxu0 0.0
      %550 = vmatpush1.msra.mxu0 0.0
      %551 = vmatprep.subr.mxu0 0.0
      %552 = vmatpush1.msra.mxu0 0.0
      %553 = vmatprep.subr.mxu0 0.0
      %554 = vmatpush1.msra.mxu0 0.0
      %555 = vmatprep.subr.mxu0 0.0
      %556 = vmatpush1.msra.mxu0 0.0
      %557 = vmatprep.subr.mxu0 0.0
      %558 = vmatpush1.msra.mxu0 0.0
      %559 = vmatprep.subr.mxu0 0.0
      %560 = vmatpush1.msra.mxu0 0.0
      %561 = vmatprep.subr.mxu0 0.0
      %562 = vmatpush1.msra.mxu0 0.0
      %563 = vmatprep.subr.mxu0 0.0
      %564 = vmatpush1.msra.mxu0 0.0
      %565 = vmatprep.subr.mxu0 %v509
      %566 = vmatpush1.msra.mxu0 %v508
      %567 = vmatprep.subr.mxu0 0.0
      %568 = vmatpush2.msra.mxu0 0.0
      %569 = vmatprep.subr.mxu0 0.0
      %570 = vmatpush2.msra.mxu0 0.0
      %571 = vmatprep.subr.mxu0 0.0
      %572 = vmatpush2.msra.mxu0 0.0
      %573 = vmatprep.subr.mxu0 0.0
      %574 = vmatpush2.msra.mxu0 0.0
      %575 = vmatprep.subr.mxu0 0.0
      %576 = vmatpush2.msra.mxu0 0.0
      %577 = vmatprep.subr.mxu0 0.0
      %578 = vmatpush2.msra.mxu0 0.0
      %579 = vmatprep.subr.mxu0 0.0
      %580 = vmatpush2.msra.mxu0 0.0
      %581 = vmatprep.subr.mxu0 0.0
      %582 = vmatpush2.msra.mxu0 0.0
      %583 = vmatprep.subr.mxu0 0.0
      %584 = vmatpush2.msra.mxu0 0.0
      %585 = vmatprep.subr.mxu0 0.0
      %586 = vmatpush2.msra.mxu0 0.0
      %587 = vmatprep.subr.mxu0 0.0
      %588 = vmatpush2.msra.mxu0 0.0
      %589 = vmatprep.subr.mxu0 0.0
      %590 = vmatpush2.msra.mxu0 0.0
      %591 = vmatprep.subr.mxu0 0.0
      %592 = vmatpush2.msra.mxu0 0.0
      %593 = vmatprep.subr.mxu0 0.0
      %594 = vmatpush2.msra.mxu0 0.0
      %595 = vmatprep.subr.mxu0 0.0
      %596 = vmatpush2.msra.mxu0 0.0
      %597 = vmatprep.subr.mxu0 0.0
      %598 = vmatpush2.msra.mxu0 0.0
      %599 = vmatprep.mubr.f32.mxu0 0.0
      %600 = vmatmul.mubr.f32.gmra.mxu0 %v530
      %v601 = vpop.f32.mrf.mxu0
      %v602 = vadd.f32 %v521, %v601
      %v603 = vpop.f32.mrf.mxu0
      %v604 = vadd.f32 %v521, %v603
      %605 = vmatprep.mubr.f32.mxu0 0.0
      %606 = vmatmul.mubr.f32.gmra.mxu0 %v533
      %v607 = vpop.f32.mrf.mxu0
      %v608 = vadd.f32 %v526, %v607
      %v609 = vpop.f32.mrf.mxu0
      %v610 = vadd.f32 %v526, %v609
      %611 = vdwg.mxu0
      %612 = vrot.lane.b32.xlu0 %v602, 16
      %v613 = vpop.permute.xlu0 %612
      %614 = vrot.lane.b32.xlu0 %v608, 16
      %v615 = vpop.permute.xlu0 %614
      %616 = vrot.lane.b32.xlu0 %v604, 16
      %v617 = vpop.permute.xlu0 %616
      %618 = vrot.lane.b32.xlu0 %v610, 16
      %v619 = vpop.permute.xlu0 %618
      %v620 = vlaneseq
      %v621 = vand.u32 %v620, 127
      %vm622 = vcmp.lt.s32.totalorder %v621, 16
      %v623 = vsel %vm622, %v613, %v617
      %v624 = vsel %vm622, %v615, %v619
      %v625 = vsel %vm622, %v617, %v613
      %v626 = vsel %vm622, %v619, %v615
      %v628 = vlaneseq
      %v629 = vshrl.u32 %v628, 7
      %v630 = vsub.s32 0, %v629
      %v631 = vrot.slane %v501, %v630
      %v632 = vlaneseq
      %v633 = vshrl.u32 %v632, 7
      %v634 = vsub.s32 1, %v633
      %v635 = vrot.slane %v501, %v634
      %v638 = vmul.f32 %v625, %v631
      %v639 = vmul.f32 %v623, %v635
      %v640 = vmul.f32 %v626, %v631
      %v641 = vmul.f32 %v624, %v635
      %642 = vrot.lane.b32.xlu0 %v602, 112
      %v643 = vpop.permute.xlu0 %642
      %644 = vrot.lane.b32.xlu0 %v608, 112
      %v645 = vpop.permute.xlu0 %644
      %646 = vrot.lane.b32.xlu0 %v604, 112
      %v647 = vpop.permute.xlu0 %646
      %648 = vrot.lane.b32.xlu0 %v610, 112
      %v649 = vpop.permute.xlu0 %648
      %vm650 = vcmp.lt.s32.totalorder %v621, 112
      %v651 = vsel %vm650, %v643, %v647
      %v652 = vsel %vm650, %v645, %v649
      %v653 = vsel %vm650, %v647, %v643
      %v654 = vsel %vm650, %v649, %v645
      %v656 = vlaneseq
      %v657 = vshrl.u32 %v656, 7
      %v658 = vsub.s32 0, %v657
      %v659 = vrot.slane %v503, %v658
      %v660 = vlaneseq
      %v661 = vshrl.u32 %v660, 7
      %v662 = vsub.s32 1, %v661
      %v663 = vrot.slane %v503, %v662
      %v666 = vmul.f32 %v651, %v659
      %v667 = vmul.f32 %v653, %v663
      %v668 = vmul.f32 %v652, %v659
      %v669 = vmul.f32 %v654, %v663
      %v670 = vld [vmem:[%s4] sm:$0xff]
      %v671 = vld [vmem:[%s4 + $0x8] sm:$0xff]
      %673 = vset.pattern.permute.xlu0 0
      %674 = vperm.xlu0 %673, %v670
      %v675 = vpop.permute.xlu0 %674
      %678 = vset.pattern.permute.xlu0 0
      %679 = vperm.xlu0 %678, %v671
      %v680 = vpop.permute.xlu0 %679
      %v682 = vmul.f32 %v675, %v638
      %v683 = vmul.f32 %v675, %v639
      %v684 = vmul.f32 %v680, %v640
      %v685 = vmul.f32 %v680, %v641
      %s686 = scalar_lea.vmem %s4, 48
      %v687 = vld [vmem:[%s686] sm:$0xff]
      %v688 = vld [vmem:[%s686 + $0x8] sm:$0xff]
      %690 = vset.pattern.permute.xlu0 0
      %691 = vperm.xlu0 %690, %v687
      %v692 = vpop.permute.xlu0 %691
      %695 = vset.pattern.permute.xlu0 0
      %696 = vperm.xlu0 %695, %v688
      %v697 = vpop.permute.xlu0 %696
      %v699 = vmul.f32 %v692, %v602
      %v700 = vmul.f32 %v692, %v604
      %v701 = vmul.f32 %v697, %v608
      %v702 = vmul.f32 %v697, %v610
      %v703 = vadd.f32 %v682, %v699
      %v704 = vadd.f32 %v683, %v700
      %v705 = vadd.f32 %v684, %v701
      %v706 = vadd.f32 %v685, %v702
      %s707 = scalar_lea.vmem %s4, 96
      %v708 = vld [vmem:[%s707] sm:$0xff]
      %v709 = vld [vmem:[%s707 + $0x8] sm:$0xff]
      %711 = vset.pattern.permute.xlu0 0
      %712 = vperm.xlu0 %711, %v708
      %v713 = vpop.permute.xlu0 %712
      %716 = vset.pattern.permute.xlu0 0
      %717 = vperm.xlu0 %716, %v709
      %v718 = vpop.permute.xlu0 %717
      %v720 = vmul.f32 %v713, %v666
      %v721 = vmul.f32 %v713, %v667
      %v722 = vmul.f32 %v718, %v668
      %v723 = vmul.f32 %v718, %v669
      %v724 = vadd.f32 %v703, %v720
      %v725 = vadd.f32 %v704, %v721
      %v726 = vadd.f32 %v705, %v722
      %v727 = vadd.f32 %v706, %v723
      %s728 = scalar_lea.vmem %s4, 16
      %v729 = vld [vmem:[%s728] sm:$0xff]
      %v730 = vld [vmem:[%s728 + $0x8] sm:$0xff]
      %732 = vset.pattern.permute.xlu0 0
      %733 = vperm.xlu0 %732, %v729
      %v734 = vpop.permute.xlu0 %733
      %737 = vset.pattern.permute.xlu0 0
      %738 = vperm.xlu0 %737, %v730
      %v739 = vpop.permute.xlu0 %738
      %v741 = vmul.f32 %v734, %v638
      %v742 = vmul.f32 %v734, %v639
      %v743 = vmul.f32 %v739, %v640
      %v744 = vmul.f32 %v739, %v641
      %s745 = scalar_lea.vmem %s4, 64
      %v746 = vld [vmem:[%s745] sm:$0xff]
      %v747 = vld [vmem:[%s745 + $0x8] sm:$0xff]
      %749 = vset.pattern.permute.xlu0 0
      %750 = vperm.xlu0 %749, %v746
      %v751 = vpop.permute.xlu0 %750
      %754 = vset.pattern.permute.xlu0 0
      %755 = vperm.xlu0 %754, %v747
      %v756 = vpop.permute.xlu0 %755
      %v758 = vmul.f32 %v751, %v602
      %v759 = vmul.f32 %v751, %v604
      %v760 = vmul.f32 %v756, %v608
      %v761 = vmul.f32 %v756, %v610
      %v762 = vadd.f32 %v741, %v758
      %v763 = vadd.f32 %v742, %v759
      %v764 = vadd.f32 %v743, %v760
      %v765 = vadd.f32 %v744, %v761
      %s766 = scalar_lea.vmem %s4, 112
      %v767 = vld [vmem:[%s766] sm:$0xff]
      %v768 = vld [vmem:[%s766 + $0x8] sm:$0xff]
      %770 = vset.pattern.permute.xlu0 0
      %771 = vperm.xlu0 %770, %v767
      %v772 = vpop.permute.xlu0 %771
      %775 = vset.pattern.permute.xlu0 0
      %776 = vperm.xlu0 %775, %v768
      %v777 = vpop.permute.xlu0 %776
      %v779 = vmul.f32 %v772, %v666
      %v780 = vmul.f32 %v772, %v667
      %v781 = vmul.f32 %v777, %v668
      %v782 = vmul.f32 %v777, %v669
      %v783 = vadd.f32 %v762, %v779
      %v784 = vadd.f32 %v763, %v780
      %v785 = vadd.f32 %v764, %v781
      %v786 = vadd.f32 %v765, %v782
      %s787 = scalar_lea.vmem %s4, 32
      %v788 = vld [vmem:[%s787] sm:$0xff]
      %v789 = vld [vmem:[%s787 + $0x8] sm:$0xff]
      %791 = vset.pattern.permute.xlu0 0
      %792 = vperm.xlu0 %791, %v788
      %v793 = vpop.permute.xlu0 %792
      %796 = vset.pattern.permute.xlu0 0
      %797 = vperm.xlu0 %796, %v789
      %v798 = vpop.permute.xlu0 %797
      %v800 = vmul.f32 %v793, %v638
      %v801 = vmul.f32 %v793, %v639
      %v802 = vmul.f32 %v798, %v640
      %v803 = vmul.f32 %v798, %v641
      %s804 = scalar_lea.vmem %s4, 80
      %v805 = vld [vmem:[%s804] sm:$0xff]
      %v806 = vld [vmem:[%s804 + $0x8] sm:$0xff]
      %808 = vset.pattern.permute.xlu0 0
      %809 = vperm.xlu0 %808, %v805
      %v810 = vpop.permute.xlu0 %809
      %813 = vset.pattern.permute.xlu0 0
      %814 = vperm.xlu0 %813, %v806
      %v815 = vpop.permute.xlu0 %814
      %v817 = vmul.f32 %v810, %v602
      %v818 = vmul.f32 %v810, %v604
      %v819 = vmul.f32 %v815, %v608
      %v820 = vmul.f32 %v815, %v610
      %v821 = vadd.f32 %v800, %v817
      %v822 = vadd.f32 %v801, %v818
      %v823 = vadd.f32 %v802, %v819
      %v824 = vadd.f32 %v803, %v820
      %s825 = scalar_lea.vmem %s4, 128
      %v826 = vld [vmem:[%s825] sm:$0xff]
      %v827 = vld [vmem:[%s825 + $0x8] sm:$0xff]
      %829 = vset.pattern.permute.xlu0 0
      %830 = vperm.xlu0 %829, %v826
      %v831 = vpop.permute.xlu0 %830
      %834 = vset.pattern.permute.xlu0 0
      %835 = vperm.xlu0 %834, %v827
      %v836 = vpop.permute.xlu0 %835
      %v838 = vmul.f32 %v831, %v666
      %v839 = vmul.f32 %v831, %v667
      %v840 = vmul.f32 %v836, %v668
      %v841 = vmul.f32 %v836, %v669
      %v842 = vadd.f32 %v821, %v838
      %v843 = vadd.f32 %v822, %v839
      %v844 = vadd.f32 %v823, %v840
      %v845 = vadd.f32 %v824, %v841
      %847 = vset.pattern.permute.xlu0 0
      %848 = vperm.xlu0 %847, %v516
      %v849 = vpop.permute.xlu0 %848
      %852 = vset.pattern.permute.xlu0 0
      %853 = vperm.xlu0 %852, %v517
      %v854 = vpop.permute.xlu0 %853
      %v856 = vadd.f32 %v783, %v849
      %v857 = vadd.f32 %v784, %v849
      %v858 = vadd.f32 %v785, %v854
      %v859 = vadd.f32 %v786, %v854
      %860 = vrot.lane.b32.xlu0 %v724, 1
      %v861 = vpop.permute.xlu0 %860
      %862 = vrot.lane.b32.xlu0 %v726, 1
      %v863 = vpop.permute.xlu0 %862
      %864 = vrot.lane.b32.xlu0 %v725, 1
      %v865 = vpop.permute.xlu0 %864
      %866 = vrot.lane.b32.xlu0 %v727, 1
      %v867 = vpop.permute.xlu0 %866
      %vm868 = vcmp.lt.s32.totalorder %v621, 1
      %v869 = vsel %vm868, %v861, %v865
      %v870 = vsel %vm868, %v863, %v867
      %v871 = vsel %vm868, %v865, %v861
      %v872 = vsel %vm868, %v867, %v863
      %v874 = vlaneseq
      %v875 = vshrl.u32 %v874, 7
      %v876 = vsub.s32 0, %v875
      %v877 = vrot.slane %v505, %v876
      %v878 = vlaneseq
      %v879 = vshrl.u32 %v878, 7
      %v880 = vsub.s32 1, %v879
      %v881 = vrot.slane %v505, %v880
      %v884 = vmul.f32 %v871, %v877
      %v885 = vmul.f32 %v869, %v881
      %v886 = vmul.f32 %v872, %v877
      %v887 = vmul.f32 %v870, %v881
      %v888 = vadd.f32 %v856, %v884
      %v889 = vadd.f32 %v857, %v885
      %v890 = vadd.f32 %v858, %v886
      %v891 = vadd.f32 %v859, %v887
      %892 = vrot.lane.b32.xlu0 %v842, 127
      %v893 = vpop.permute.xlu0 %892
      %894 = vrot.lane.b32.xlu0 %v844, 127
      %v895 = vpop.permute.xlu0 %894
      %896 = vrot.lane.b32.xlu0 %v843, 127
      %v897 = vpop.permute.xlu0 %896
      %898 = vrot.lane.b32.xlu0 %v845, 127
      %v899 = vpop.permute.xlu0 %898
      %vm900 = vcmp.lt.s32.totalorder %v621, 127
      %v901 = vsel %vm900, %v893, %v897
      %v902 = vsel %vm900, %v895, %v899
      %v903 = vsel %vm900, %v897, %v893
      %v904 = vsel %vm900, %v899, %v895
      %v906 = vlaneseq
      %v907 = vshrl.u32 %v906, 7
      %v908 = vsub.s32 0, %v907
      %v909 = vrot.slane %v507, %v908
      %v910 = vlaneseq
      %v911 = vshrl.u32 %v910, 7
      %v912 = vsub.s32 1, %v911
      %v913 = vrot.slane %v507, %v912
      %v916 = vmul.f32 %v901, %v909
      %v917 = vmul.f32 %v903, %v913
      %v918 = vmul.f32 %v902, %v909
      %v919 = vmul.f32 %v904, %v913
      %v920 = vadd.f32 %v888, %v916
      %v921 = vadd.f32 %v889, %v917
      %v922 = vadd.f32 %v890, %v918
      %v923 = vadd.f32 %v891, %v919
      %v924 = vld [vmem:[%s6] sm:$0xff]
      %v925 = vld [vmem:[%s6 + $0x8] sm:$0xff]
      %v926 = vld [vmem:[%s7] sm:$0xff]
      %v927 = vld [vmem:[%s7 + $0x8] sm:$0xff]
      %v928 = vld [vmem:[%s9] sm:$0xff]
      %v929 = vld [vmem:[%s9 + $0x8] sm:$0xff]
      %931 = vset.pattern.permute.xlu0 0
      %932 = vperm.xlu0 %931, %v926
      %v933 = vpop.permute.xlu0 %932
      %936 = vset.pattern.permute.xlu0 0
      %937 = vperm.xlu0 %936, %v927
      %v938 = vpop.permute.xlu0 %937
      %v941 = vsel %vm528, %v924, 0
      %v944 = vsel %vm528, %v925, 0
      %946 = vmatprep.subr.mxu0 0.0
      %947 = vmatpush1.msra.mxu0 0.0
      %948 = vmatprep.subr.mxu0 0.0
      %949 = vmatpush1.msra.mxu0 0.0
      %950 = vmatprep.subr.mxu0 0.0
      %951 = vmatpush1.msra.mxu0 0.0
      %952 = vmatprep.subr.mxu0 0.0
      %953 = vmatpush1.msra.mxu0 0.0
      %954 = vmatprep.subr.mxu0 0.0
      %955 = vmatpush1.msra.mxu0 0.0
      %956 = vmatprep.subr.mxu0 0.0
      %957 = vmatpush1.msra.mxu0 0.0
      %958 = vmatprep.subr.mxu0 0.0
      %959 = vmatpush1.msra.mxu0 0.0
      %960 = vmatprep.subr.mxu0 0.0
      %961 = vmatpush1.msra.mxu0 0.0
      %962 = vmatprep.subr.mxu0 0.0
      %963 = vmatpush1.msra.mxu0 0.0
      %964 = vmatprep.subr.mxu0 0.0
      %965 = vmatpush1.msra.mxu0 0.0
      %966 = vmatprep.subr.mxu0 0.0
      %967 = vmatpush1.msra.mxu0 0.0
      %968 = vmatprep.subr.mxu0 0.0
      %969 = vmatpush1.msra.mxu0 0.0
      %970 = vmatprep.subr.mxu0 0.0
      %971 = vmatpush1.msra.mxu0 0.0
      %972 = vmatprep.subr.mxu0 0.0
      %973 = vmatpush1.msra.mxu0 0.0
      %974 = vmatprep.subr.mxu0 0.0
      %975 = vmatpush1.msra.mxu0 0.0
      %976 = vmatprep.subr.mxu0 %v511
      %977 = vmatpush1.msra.mxu0 %v510
      %978 = vmatprep.subr.mxu0 0.0
      %979 = vmatpush2.msra.mxu0 0.0
      %980 = vmatprep.subr.mxu0 0.0
      %981 = vmatpush2.msra.mxu0 0.0
      %982 = vmatprep.subr.mxu0 0.0
      %983 = vmatpush2.msra.mxu0 0.0
      %984 = vmatprep.subr.mxu0 0.0
      %985 = vmatpush2.msra.mxu0 0.0
      %986 = vmatprep.subr.mxu0 0.0
      %987 = vmatpush2.msra.mxu0 0.0
      %988 = vmatprep.subr.mxu0 0.0
      %989 = vmatpush2.msra.mxu0 0.0
      %990 = vmatprep.subr.mxu0 0.0
      %991 = vmatpush2.msra.mxu0 0.0
      %992 = vmatprep.subr.mxu0 0.0
      %993 = vmatpush2.msra.mxu0 0.0
      %994 = vmatprep.subr.mxu0 0.0
      %995 = vmatpush2.msra.mxu0 0.0
      %996 = vmatprep.subr.mxu0 0.0
      %997 = vmatpush2.msra.mxu0 0.0
      %998 = vmatprep.subr.mxu0 0.0
      %999 = vmatpush2.msra.mxu0 0.0
      %1000 = vmatprep.subr.mxu0 0.0
      %1001 = vmatpush2.msra.mxu0 0.0
      %1002 = vmatprep.subr.mxu0 0.0
      %1003 = vmatpush2.msra.mxu0 0.0
      %1004 = vmatprep.subr.mxu0 0.0
      %1005 = vmatpush2.msra.mxu0 0.0
      %1006 = vmatprep.subr.mxu0 0.0
      %1007 = vmatpush2.msra.mxu0 0.0
      %1008 = vmatprep.subr.mxu0 0.0
      %1009 = vmatpush2.msra.mxu0 0.0
      %1010 = vmatprep.mubr.f32.mxu0 0.0
      %1011 = vmatmul.mubr.f32.gmra.mxu0 %v941
      %v1012 = vpop.f32.mrf.mxu0
      %v1013 = vadd.f32 %v933, %v1012
      %v1014 = vpop.f32.mrf.mxu0
      %v1015 = vadd.f32 %v933, %v1014
      %1016 = vmatprep.mubr.f32.mxu0 0.0
      %1017 = vmatmul.mubr.f32.gmra.mxu0 %v944
      %v1018 = vpop.f32.mrf.mxu0
      %v1019 = vadd.f32 %v938, %v1018
      %v1020 = vpop.f32.mrf.mxu0
      %v1021 = vadd.f32 %v938, %v1020
      %1022 = vdwg.mxu0
      %1023 = vrot.lane.b32.xlu0 %v1013, 16
      %v1024 = vpop.permute.xlu0 %1023
      %1025 = vrot.lane.b32.xlu0 %v1019, 16
      %v1026 = vpop.permute.xlu0 %1025
      %1027 = vrot.lane.b32.xlu0 %v1015, 16
      %v1028 = vpop.permute.xlu0 %1027
      %1029 = vrot.lane.b32.xlu0 %v1021, 16
      %v1030 = vpop.permute.xlu0 %1029
      %v1031 = vsel %vm622, %v1024, %v1028
      %v1032 = vsel %vm622, %v1026, %v1030
      %v1033 = vsel %vm622, %v1028, %v1024
      %v1034 = vsel %vm622, %v1030, %v1026
      %v1035 = vmul.f32 %v1033, %v631
      %v1036 = vmul.f32 %v1031, %v635
      %v1037 = vmul.f32 %v1034, %v631
      %v1038 = vmul.f32 %v1032, %v635
      %1039 = vrot.lane.b32.xlu0 %v1013, 112
      %v1040 = vpop.permute.xlu0 %1039
      %1041 = vrot.lane.b32.xlu0 %v1019, 112
      %v1042 = vpop.permute.xlu0 %1041
      %1043 = vrot.lane.b32.xlu0 %v1015, 112
      %v1044 = vpop.permute.xlu0 %1043
      %1045 = vrot.lane.b32.xlu0 %v1021, 112
      %v1046 = vpop.permute.xlu0 %1045
      %v1047 = vsel %vm650, %v1040, %v1044
      %v1048 = vsel %vm650, %v1042, %v1046
      %v1049 = vsel %vm650, %v1044, %v1040
      %v1050 = vsel %vm650, %v1046, %v1042
      %v1051 = vmul.f32 %v1047, %v659
      %v1052 = vmul.f32 %v1049, %v663
      %v1053 = vmul.f32 %v1048, %v659
      %v1054 = vmul.f32 %v1050, %v663
      %v1055 = vld [vmem:[%s8] sm:$0xff]
      %v1056 = vld [vmem:[%s8 + $0x8] sm:$0xff]
      %1058 = vset.pattern.permute.xlu0 0
      %1059 = vperm.xlu0 %1058, %v1055
      %v1060 = vpop.permute.xlu0 %1059
      %1063 = vset.pattern.permute.xlu0 0
      %1064 = vperm.xlu0 %1063, %v1056
      %v1065 = vpop.permute.xlu0 %1064
      %v1067 = vmul.f32 %v1060, %v1035
      %v1068 = vmul.f32 %v1060, %v1036
      %v1069 = vmul.f32 %v1065, %v1037
      %v1070 = vmul.f32 %v1065, %v1038
      %s1071 = scalar_lea.vmem %s8, 48
      %v1072 = vld [vmem:[%s1071] sm:$0xff]
      %v1073 = vld [vmem:[%s1071 + $0x8] sm:$0xff]
      %1075 = vset.pattern.permute.xlu0 0
      %1076 = vperm.xlu0 %1075, %v1072
      %v1077 = vpop.permute.xlu0 %1076
      %1080 = vset.pattern.permute.xlu0 0
      %1081 = vperm.xlu0 %1080, %v1073
      %v1082 = vpop.permute.xlu0 %1081
      %v1084 = vmul.f32 %v1077, %v1013
      %v1085 = vmul.f32 %v1077, %v1015
      %v1086 = vmul.f32 %v1082, %v1019
      %v1087 = vmul.f32 %v1082, %v1021
      %v1088 = vadd.f32 %v1067, %v1084
      %v1089 = vadd.f32 %v1068, %v1085
      %v1090 = vadd.f32 %v1069, %v1086
      %v1091 = vadd.f32 %v1070, %v1087
      %s1092 = scalar_lea.vmem %s8, 96
      %v1093 = vld [vmem:[%s1092] sm:$0xff]
      %v1094 = vld [vmem:[%s1092 + $0x8] sm:$0xff]
      %1096 = vset.pattern.permute.xlu0 0
      %1097 = vperm.xlu0 %1096, %v1093
      %v1098 = vpop.permute.xlu0 %1097
      %1101 = vset.pattern.permute.xlu0 0
      %1102 = vperm.xlu0 %1101, %v1094
      %v1103 = vpop.permute.xlu0 %1102
      %v1105 = vmul.f32 %v1098, %v1051
      %v1106 = vmul.f32 %v1098, %v1052
      %v1107 = vmul.f32 %v1103, %v1053
      %v1108 = vmul.f32 %v1103, %v1054
      %v1109 = vadd.f32 %v1088, %v1105
      %v1110 = vadd.f32 %v1089, %v1106
      %v1111 = vadd.f32 %v1090, %v1107
      %v1112 = vadd.f32 %v1091, %v1108
      %s1113 = scalar_lea.vmem %s8, 16
      %v1114 = vld [vmem:[%s1113] sm:$0xff]
      %v1115 = vld [vmem:[%s1113 + $0x8] sm:$0xff]
      %1117 = vset.pattern.permute.xlu0 0
      %1118 = vperm.xlu0 %1117, %v1114
      %v1119 = vpop.permute.xlu0 %1118
      %1122 = vset.pattern.permute.xlu0 0
      %1123 = vperm.xlu0 %1122, %v1115
      %v1124 = vpop.permute.xlu0 %1123
      %v1126 = vmul.f32 %v1119, %v1035
      %v1127 = vmul.f32 %v1119, %v1036
      %v1128 = vmul.f32 %v1124, %v1037
      %v1129 = vmul.f32 %v1124, %v1038
      %s1130 = scalar_lea.vmem %s8, 64
      %v1131 = vld [vmem:[%s1130] sm:$0xff]
      %v1132 = vld [vmem:[%s1130 + $0x8] sm:$0xff]
      %1134 = vset.pattern.permute.xlu0 0
      %1135 = vperm.xlu0 %1134, %v1131
      %v1136 = vpop.permute.xlu0 %1135
      %1139 = vset.pattern.permute.xlu0 0
      %1140 = vperm.xlu0 %1139, %v1132
      %v1141 = vpop.permute.xlu0 %1140
      %v1143 = vmul.f32 %v1136, %v1013
      %v1144 = vmul.f32 %v1136, %v1015
      %v1145 = vmul.f32 %v1141, %v1019
      %v1146 = vmul.f32 %v1141, %v1021
      %v1147 = vadd.f32 %v1126, %v1143
      %v1148 = vadd.f32 %v1127, %v1144
      %v1149 = vadd.f32 %v1128, %v1145
      %v1150 = vadd.f32 %v1129, %v1146
      %s1151 = scalar_lea.vmem %s8, 112
      %v1152 = vld [vmem:[%s1151] sm:$0xff]
      %v1153 = vld [vmem:[%s1151 + $0x8] sm:$0xff]
      %1155 = vset.pattern.permute.xlu0 0
      %1156 = vperm.xlu0 %1155, %v1152
      %v1157 = vpop.permute.xlu0 %1156
      %1160 = vset.pattern.permute.xlu0 0
      %1161 = vperm.xlu0 %1160, %v1153
      %v1162 = vpop.permute.xlu0 %1161
      %v1164 = vmul.f32 %v1157, %v1051
      %v1165 = vmul.f32 %v1157, %v1052
      %v1166 = vmul.f32 %v1162, %v1053
      %v1167 = vmul.f32 %v1162, %v1054
      %v1168 = vadd.f32 %v1147, %v1164
      %v1169 = vadd.f32 %v1148, %v1165
      %v1170 = vadd.f32 %v1149, %v1166
      %v1171 = vadd.f32 %v1150, %v1167
      %s1172 = scalar_lea.vmem %s8, 32
      %v1173 = vld [vmem:[%s1172] sm:$0xff]
      %v1174 = vld [vmem:[%s1172 + $0x8] sm:$0xff]
      %1176 = vset.pattern.permute.xlu0 0
      %1177 = vperm.xlu0 %1176, %v1173
      %v1178 = vpop.permute.xlu0 %1177
      %1181 = vset.pattern.permute.xlu0 0
      %1182 = vperm.xlu0 %1181, %v1174
      %v1183 = vpop.permute.xlu0 %1182
      %v1185 = vmul.f32 %v1178, %v1035
      %v1186 = vmul.f32 %v1178, %v1036
      %v1187 = vmul.f32 %v1183, %v1037
      %v1188 = vmul.f32 %v1183, %v1038
      %s1189 = scalar_lea.vmem %s8, 80
      %v1190 = vld [vmem:[%s1189] sm:$0xff]
      %v1191 = vld [vmem:[%s1189 + $0x8] sm:$0xff]
      %1193 = vset.pattern.permute.xlu0 0
      %1194 = vperm.xlu0 %1193, %v1190
      %v1195 = vpop.permute.xlu0 %1194
      %1198 = vset.pattern.permute.xlu0 0
      %1199 = vperm.xlu0 %1198, %v1191
      %v1200 = vpop.permute.xlu0 %1199
      %v1202 = vmul.f32 %v1195, %v1013
      %v1203 = vmul.f32 %v1195, %v1015
      %v1204 = vmul.f32 %v1200, %v1019
      %v1205 = vmul.f32 %v1200, %v1021
      %v1206 = vadd.f32 %v1185, %v1202
      %v1207 = vadd.f32 %v1186, %v1203
      %v1208 = vadd.f32 %v1187, %v1204
      %v1209 = vadd.f32 %v1188, %v1205
      %s1210 = scalar_lea.vmem %s8, 128
      %v1211 = vld [vmem:[%s1210] sm:$0xff]
      %v1212 = vld [vmem:[%s1210 + $0x8] sm:$0xff]
      %1214 = vset.pattern.permute.xlu0 0
      %1215 = vperm.xlu0 %1214, %v1211
      %v1216 = vpop.permute.xlu0 %1215
      %1219 = vset.pattern.permute.xlu0 0
      %1220 = vperm.xlu0 %1219, %v1212
      %v1221 = vpop.permute.xlu0 %1220
      %v1223 = vmul.f32 %v1216, %v1051
      %v1224 = vmul.f32 %v1216, %v1052
      %v1225 = vmul.f32 %v1221, %v1053
      %v1226 = vmul.f32 %v1221, %v1054
      %v1227 = vadd.f32 %v1206, %v1223
      %v1228 = vadd.f32 %v1207, %v1224
      %v1229 = vadd.f32 %v1208, %v1225
      %v1230 = vadd.f32 %v1209, %v1226
      %1232 = vset.pattern.permute.xlu0 0
      %1233 = vperm.xlu0 %1232, %v928
      %v1234 = vpop.permute.xlu0 %1233
      %1237 = vset.pattern.permute.xlu0 0
      %1238 = vperm.xlu0 %1237, %v929
      %v1239 = vpop.permute.xlu0 %1238
      %v1241 = vadd.f32 %v1168, %v1234
      %v1242 = vadd.f32 %v1169, %v1234
      %v1243 = vadd.f32 %v1170, %v1239
      %v1244 = vadd.f32 %v1171, %v1239
      %1245 = vrot.lane.b32.xlu0 %v1109, 1
      %v1246 = vpop.permute.xlu0 %1245
      %1247 = vrot.lane.b32.xlu0 %v1111, 1
      %v1248 = vpop.permute.xlu0 %1247
      %1249 = vrot.lane.b32.xlu0 %v1110, 1
      %v1250 = vpop.permute.xlu0 %1249
      %1251 = vrot.lane.b32.xlu0 %v1112, 1
      %v1252 = vpop.permute.xlu0 %1251
      %v1253 = vsel %vm868, %v1246, %v1250
      %v1254 = vsel %vm868, %v1248, %v1252
      %v1255 = vsel %vm868, %v1250, %v1246
      %v1256 = vsel %vm868, %v1252, %v1248
      %v1257 = vmul.f32 %v1255, %v877
      %v1258 = vmul.f32 %v1253, %v881
      %v1259 = vmul.f32 %v1256, %v877
      %v1260 = vmul.f32 %v1254, %v881
      %v1261 = vadd.f32 %v1241, %v1257
      %v1262 = vadd.f32 %v1242, %v1258
      %v1263 = vadd.f32 %v1243, %v1259
      %v1264 = vadd.f32 %v1244, %v1260
      %1265 = vrot.lane.b32.xlu0 %v1227, 127
      %v1266 = vpop.permute.xlu0 %1265
      %1267 = vrot.lane.b32.xlu0 %v1229, 127
      %v1268 = vpop.permute.xlu0 %1267
      %1269 = vrot.lane.b32.xlu0 %v1228, 127
      %v1270 = vpop.permute.xlu0 %1269
      %1271 = vrot.lane.b32.xlu0 %v1230, 127
      %v1272 = vpop.permute.xlu0 %1271
      %v1273 = vsel %vm900, %v1266, %v1270
      %v1274 = vsel %vm900, %v1268, %v1272
      %v1275 = vsel %vm900, %v1270, %v1266
      %v1276 = vsel %vm900, %v1272, %v1268
      %v1277 = vmul.f32 %v1273, %v909
      %v1278 = vmul.f32 %v1275, %v913
      %v1279 = vmul.f32 %v1274, %v909
      %v1280 = vmul.f32 %v1276, %v913
      %v1281 = vadd.f32 %v1261, %v1277
      %v1282 = vadd.f32 %v1262, %v1278
      %v1283 = vadd.f32 %v1263, %v1279
      %v1284 = vadd.f32 %v1264, %v1280
      %v1285 = vmul.f32 %v1281, %v1281
      %v1286 = vmul.f32 %v1282, %v1282
      %v1287 = vadd.f32 %v1285, %v1286
      %1288 = vadd.xlane.f32.xlu0 %v1287
      %v1289 = vpop.xlane.xlu0 %1288
      %v1290 = vmax.f32 %v1289, 1e-24
      %v1291 = vrsqrt.pop %v1290
      %v1292 = vmul.f32 %v1281, %v1291
      %v1293 = vmul.f32 %v1282, %v1291
      %v1294 = vmul.f32 %v920, %v920
      %v1295 = vmul.f32 %v921, %v921
      %v1296 = vadd.f32 %v1294, %v1295
      %1297 = vadd.xlane.f32.xlu0 %v1296
      %v1298 = vpop.xlane.xlu0 %1297
      %v1299 = vmax.f32 %v1298, 1e-24
      %v1300 = vrsqrt.pop %v1299
      %v1301 = vld [vmem:[%s11] sm:$0xff]
      %v1302 = vmul.f32 %v1300, %v1301
      %1303 = vmatprep.subr.mxu0 0.0
      %1304 = vmatpush1.xpose.msra.mxu0 0.0
      %1305 = vmatprep.subr.mxu0 0.0
      %1306 = vmatpush1.xpose.msra.mxu0 0.0
      %1307 = vmatprep.subr.mxu0 0.0
      %1308 = vmatpush1.xpose.msra.mxu0 0.0
      %1309 = vmatprep.subr.mxu0 0.0
      %1310 = vmatpush1.xpose.msra.mxu0 0.0
      %1311 = vmatprep.subr.mxu0 0.0
      %1312 = vmatpush1.xpose.msra.mxu0 0.0
      %1313 = vmatprep.subr.mxu0 0.0
      %1314 = vmatpush1.xpose.msra.mxu0 0.0
      %1315 = vmatprep.subr.mxu0 0.0
      %1316 = vmatpush1.xpose.msra.mxu0 0.0
      %1317 = vmatprep.subr.mxu0 0.0
      %1318 = vmatpush1.xpose.msra.mxu0 0.0
      %1319 = vmatprep.subr.mxu0 0.0
      %1320 = vmatpush1.xpose.msra.mxu0 0.0
      %1321 = vmatprep.subr.mxu0 0.0
      %1322 = vmatpush1.xpose.msra.mxu0 0.0
      %1323 = vmatprep.subr.mxu0 0.0
      %1324 = vmatpush1.xpose.msra.mxu0 0.0
      %1325 = vmatprep.subr.mxu0 0.0
      %1326 = vmatpush1.xpose.msra.mxu0 0.0
      %1327 = vmatprep.subr.mxu0 0.0
      %1328 = vmatpush1.xpose.msra.mxu0 0.0
      %1329 = vmatprep.subr.mxu0 0.0
      %1330 = vmatpush1.xpose.msra.mxu0 0.0
      %1331 = vmatprep.subr.mxu0 0.0
      %1332 = vmatpush1.xpose.msra.mxu0 0.0
      %1333 = vmatprep.subr.mxu0 %v1293
      %1334 = vmatpush1.xpose.msra.mxu0 %v1292
      %1335 = vmatprep.subr.mxu0 0.0
      %1336 = vmatpush2.xpose.msra.mxu0 0.0
      %1337 = vmatprep.subr.mxu0 0.0
      %1338 = vmatpush2.xpose.msra.mxu0 0.0
      %1339 = vmatprep.subr.mxu0 0.0
      %1340 = vmatpush2.xpose.msra.mxu0 0.0
      %1341 = vmatprep.subr.mxu0 0.0
      %1342 = vmatpush2.xpose.msra.mxu0 0.0
      %1343 = vmatprep.subr.mxu0 0.0
      %1344 = vmatpush2.xpose.msra.mxu0 0.0
      %1345 = vmatprep.subr.mxu0 0.0
      %1346 = vmatpush2.xpose.msra.mxu0 0.0
      %1347 = vmatprep.subr.mxu0 0.0
      %1348 = vmatpush2.xpose.msra.mxu0 0.0
      %1349 = vmatprep.subr.mxu0 0.0
      %1350 = vmatpush2.xpose.msra.mxu0 0.0
      %1351 = vmatprep.subr.mxu0 0.0
      %1352 = vmatpush2.xpose.msra.mxu0 0.0
      %1353 = vmatprep.subr.mxu0 0.0
      %1354 = vmatpush2.xpose.msra.mxu0 0.0
      %1355 = vmatprep.subr.mxu0 0.0
      %1356 = vmatpush2.xpose.msra.mxu0 0.0
      %1357 = vmatprep.subr.mxu0 0.0
      %1358 = vmatpush2.xpose.msra.mxu0 0.0
      %1359 = vmatprep.subr.mxu0 0.0
      %1360 = vmatpush2.xpose.msra.mxu0 0.0
      %1361 = vmatprep.subr.mxu0 0.0
      %1362 = vmatpush2.xpose.msra.mxu0 0.0
      %1363 = vmatprep.subr.mxu0 0.0
      %1364 = vmatpush2.xpose.msra.mxu0 0.0
      %1365 = vmatprep.subr.mxu0 0.0
      %1366 = vmatpush2.xpose.msra.mxu0 0.0
      %1367 = vmatprep.mubr.f32.mxu0 %v921
      %1368 = vmatmul.mubr.f32.gmra.mxu0 %v920
      %v1369 = vpop.f32.mrf.mxu0
      %v1370 = vadd.f32 0.0, %v1369
      %v1371 = vpop.f32.mrf.mxu0
      %1372 = vdwg.mxu0
      %1374 = vset.pattern.permute.xlu0 0
      %1375 = vperm.xlu0 %1374, %v1302
      %v1376 = vpop.permute.xlu0 %1375
      %v1378 = vmul.f32 %v1370, %v1376
      %v1379 = vld [vmem:[%s12] sm:$0xff]
      %v1380 = vadd.f32 %v1378, %v1379
      %v1381 = vsel %vm528, %v1380, -inf
      %1382 = vmax.xlane.f32.xlu0 %v1381
      %v1383 = vpop.xlane.xlu0 %1382
      %v1384 = vsub.f32 %v1380, %v1383
      %v1385 = vmul.f32 %v1384, 1.442695
      %v1386 = vpow.pop %v1385
      %v1387 = vsel %vm528, %v1386, 0.0
      %1388 = vadd.xlane.f32.xlu0 %v1387
      %v1389 = vpop.xlane.xlu0 %1388
      %v1390 = vrcp.pop %v1389
      %v1391 = vmul.f32 %v1386, %v1390
      %v1393 = vsel %vm528, %v1391, 0
      %1395 = vmatprep.subr.mxu0 0.0
      %1396 = vmatpush1.msra.mxu0 0.0
      %1397 = vmatprep.subr.mxu0 0.0
      %1398 = vmatpush1.msra.mxu0 0.0
      %1399 = vmatprep.subr.mxu0 0.0
      %1400 = vmatpush1.msra.mxu0 0.0
      %1401 = vmatprep.subr.mxu0 0.0
      %1402 = vmatpush1.msra.mxu0 0.0
      %1403 = vmatprep.subr.mxu0 0.0
      %1404 = vmatpush1.msra.mxu0 0.0
      %1405 = vmatprep.subr.mxu0 0.0
      %1406 = vmatpush1.msra.mxu0 0.0
      %1407 = vmatprep.subr.mxu0 0.0
      %1408 = vmatpush1.msra.mxu0 0.0
      %1409 = vmatprep.subr.mxu0 0.0
      %1410 = vmatpush1.msra.mxu0 0.0
      %1411 = vmatprep.subr.mxu0 0.0
      %1412 = vmatpush1.msra.mxu0 0.0
      %1413 = vmatprep.subr.mxu0 0.0
      %1414 = vmatpush1.msra.mxu0 0.0
      %1415 = vmatprep.subr.mxu0 0.0
      %1416 = vmatpush1.msra.mxu0 0.0
      %1417 = vmatprep.subr.mxu0 0.0
      %1418 = vmatpush1.msra.mxu0 0.0
      %1419 = vmatprep.subr.mxu0 0.0
      %1420 = vmatpush1.msra.mxu0 0.0
      %1421 = vmatprep.subr.mxu0 0.0
      %1422 = vmatpush1.msra.mxu0 0.0
      %1423 = vmatprep.subr.mxu0 0.0
      %1424 = vmatpush1.msra.mxu0 0.0
      %1425 = vmatprep.subr.mxu0 %v923
      %1426 = vmatpush1.msra.mxu0 %v922
      %1427 = vmatprep.subr.mxu0 0.0
      %1428 = vmatpush2.msra.mxu0 0.0
      %1429 = vmatprep.subr.mxu0 0.0
      %1430 = vmatpush2.msra.mxu0 0.0
      %1431 = vmatprep.subr.mxu0 0.0
      %1432 = vmatpush2.msra.mxu0 0.0
      %1433 = vmatprep.subr.mxu0 0.0
      %1434 = vmatpush2.msra.mxu0 0.0
      %1435 = vmatprep.subr.mxu0 0.0
      %1436 = vmatpush2.msra.mxu0 0.0
      %1437 = vmatprep.subr.mxu0 0.0
      %1438 = vmatpush2.msra.mxu0 0.0
      %1439 = vmatprep.subr.mxu0 0.0
      %1440 = vmatpush2.msra.mxu0 0.0
      %1441 = vmatprep.subr.mxu0 0.0
      %1442 = vmatpush2.msra.mxu0 0.0
      %1443 = vmatprep.subr.mxu0 0.0
      %1444 = vmatpush2.msra.mxu0 0.0
      %1445 = vmatprep.subr.mxu0 0.0
      %1446 = vmatpush2.msra.mxu0 0.0
      %1447 = vmatprep.subr.mxu0 0.0
      %1448 = vmatpush2.msra.mxu0 0.0
      %1449 = vmatprep.subr.mxu0 0.0
      %1450 = vmatpush2.msra.mxu0 0.0
      %1451 = vmatprep.subr.mxu0 0.0
      %1452 = vmatpush2.msra.mxu0 0.0
      %1453 = vmatprep.subr.mxu0 0.0
      %1454 = vmatpush2.msra.mxu0 0.0
      %1455 = vmatprep.subr.mxu0 0.0
      %1456 = vmatpush2.msra.mxu0 0.0
      %1457 = vmatprep.subr.mxu0 0.0
      %1458 = vmatpush2.msra.mxu0 0.0
      %1459 = vmatprep.mubr.f32.mxu0 0.0
      %1460 = vmatmul.mubr.f32.gmra.mxu0 %v1393
      %v1461 = vpop.f32.mrf.mxu0
      %v1462 = vadd.f32 %v922, %v1461
      %v1463 = vpop.f32.mrf.mxu0
      %v1464 = vadd.f32 %v923, %v1463
      %1465 = vdwg.mxu0
      %v1466 = vadd.f32 %v1462, %v508
      %v1467 = vadd.f32 %v1464, %v509
      %1468 = vst [vmem:[%s495] sm:$0xff] %v1466
      %1469 = vst [vmem:[%s495 + $0x8] sm:$0xff] %v1467
      %1470 = vmatprep.subr.mxu0 0.0
      %1471 = vmatpush1.msra.mxu0 0.0
      %1472 = vmatprep.subr.mxu0 0.0
      %1473 = vmatpush1.msra.mxu0 0.0
      %1474 = vmatprep.subr.mxu0 0.0
      %1475 = vmatpush1.msra.mxu0 0.0
      %1476 = vmatprep.subr.mxu0 0.0
      %1477 = vmatpush1.msra.mxu0 0.0
      %1478 = vmatprep.subr.mxu0 0.0
      %1479 = vmatpush1.msra.mxu0 0.0
      %1480 = vmatprep.subr.mxu0 0.0
      %1481 = vmatpush1.msra.mxu0 0.0
      %1482 = vmatprep.subr.mxu0 0.0
      %1483 = vmatpush1.msra.mxu0 0.0
      %1484 = vmatprep.subr.mxu0 0.0
      %1485 = vmatpush1.msra.mxu0 0.0
      %1486 = vmatprep.subr.mxu0 0.0
      %1487 = vmatpush1.msra.mxu0 0.0
      %1488 = vmatprep.subr.mxu0 0.0
      %1489 = vmatpush1.msra.mxu0 0.0
      %1490 = vmatprep.subr.mxu0 0.0
      %1491 = vmatpush1.msra.mxu0 0.0
      %1492 = vmatprep.subr.mxu0 0.0
      %1493 = vmatpush1.msra.mxu0 0.0
      %1494 = vmatprep.subr.mxu0 0.0
      %1495 = vmatpush1.msra.mxu0 0.0
      %1496 = vmatprep.subr.mxu0 0.0
      %1497 = vmatpush1.msra.mxu0 0.0
      %1498 = vmatprep.subr.mxu0 0.0
      %1499 = vmatpush1.msra.mxu0 0.0
      %1500 = vmatprep.subr.mxu0 %v1284
      %1501 = vmatpush1.msra.mxu0 %v1283
      %1502 = vmatprep.subr.mxu0 0.0
      %1503 = vmatpush2.msra.mxu0 0.0
      %1504 = vmatprep.subr.mxu0 0.0
      %1505 = vmatpush2.msra.mxu0 0.0
      %1506 = vmatprep.subr.mxu0 0.0
      %1507 = vmatpush2.msra.mxu0 0.0
      %1508 = vmatprep.subr.mxu0 0.0
      %1509 = vmatpush2.msra.mxu0 0.0
      %1510 = vmatprep.subr.mxu0 0.0
      %1511 = vmatpush2.msra.mxu0 0.0
      %1512 = vmatprep.subr.mxu0 0.0
      %1513 = vmatpush2.msra.mxu0 0.0
      %1514 = vmatprep.subr.mxu0 0.0
      %1515 = vmatpush2.msra.mxu0 0.0
      %1516 = vmatprep.subr.mxu0 0.0
      %1517 = vmatpush2.msra.mxu0 0.0
      %1518 = vmatprep.subr.mxu0 0.0
      %1519 = vmatpush2.msra.mxu0 0.0
      %1520 = vmatprep.subr.mxu0 0.0
      %1521 = vmatpush2.msra.mxu0 0.0
      %1522 = vmatprep.subr.mxu0 0.0
      %1523 = vmatpush2.msra.mxu0 0.0
      %1524 = vmatprep.subr.mxu0 0.0
      %1525 = vmatpush2.msra.mxu0 0.0
      %1526 = vmatprep.subr.mxu0 0.0
      %1527 = vmatpush2.msra.mxu0 0.0
      %1528 = vmatprep.subr.mxu0 0.0
      %1529 = vmatpush2.msra.mxu0 0.0
      %1530 = vmatprep.subr.mxu0 0.0
      %1531 = vmatpush2.msra.mxu0 0.0
      %1532 = vmatprep.subr.mxu0 0.0
      %1533 = vmatpush2.msra.mxu0 0.0
      %1534 = vmatprep.mubr.f32.mxu0 0.0
      %1535 = vmatmul.mubr.f32.gmra.mxu0 %v1393
      %v1536 = vpop.f32.mrf.mxu0
      %v1537 = vadd.f32 %v1283, %v1536
      %v1538 = vpop.f32.mrf.mxu0
      %v1539 = vadd.f32 %v1284, %v1538
      %1540 = vdwg.mxu0
      %v1541 = vadd.f32 %v1537, %v510
      %v1542 = vadd.f32 %v1539, %v511
      %1543 = vst [vmem:[%s500] sm:$0xff] %v1541
      %1544 = vst [vmem:[%s500 + $0x8] sm:$0xff] %v1542
      %p1545 = scmp.lt.s32.totalorder %s26, 1
      %s1546 = scalar_select %p1545, %s26, 1
      %s1547 = smul.addr %s1546, 2
      %s1548 = smul.addr %s1547, 8
      %s1549 = scalar_lea.vmem %s13, %s1548
      %p1550 = scmp.lt.s32.totalorder %s26, 1
      %s1551 = scalar_select %p1550, %s26, 1
      %s1552 = smul.addr %s1551, 2
      %s1553 = smul.addr %s1552, 8
      %s1554 = scalar_lea.vmem %s14, %s1553
      // Predicated region
      $region73: #{scfa_forward.1} parent=71 // pred_check
        %p1555 = pneg %p327
      $region74: #{scfa_forward.1} parent=71 // pred_check_branch
        %1557 = sbr.rel (%p1555) target = $region76
      $region75: #{scfa_forward.1} parent=71 // pred_region
        _
      $region76: #{scfa_forward.1} parent=71 // pred_fallthru
        _
      // Predicated region
      $region77: #{scfa_forward.1} parent=71 // pred_check
        %p1558 = pneg %p353
      $region78: #{scfa_forward.1} parent=71 // pred_check_branch
        %1560 = sbr.rel (%p1558) target = $region80
      $region79: #{scfa_forward.1} parent=71 // pred_region
        _
      $region80: #{scfa_forward.1} parent=71 // pred_fallthru
        _
    $region72: #{scfa_forward.1} parent=5 // pred_fallthru
      _
    %p1561 = scmp.le.s32.totalorder 2, %s21
    // Predicated region
    $region81: #{scfa_forward.1} parent=5 // pred_check
      %p1562 = pneg %p1561
    $region82: #{scfa_forward.1} parent=5 // pred_check_branch
      %1564 = sbr.rel (%p1562) target = $region84
    $region83: #{scfa_forward.1} parent=5 // pred_region
      %s1565 = ssub.s32 %s21, 2
      // Predicated region
      $region85: #{scfa_forward.1} parent=83 // pred_check
        %p1566 = pneg %p333
      $region86: #{scfa_forward.1} parent=83 // pred_check_branch
        %1568 = sbr.rel (%p1566) target = $region88
      $region87: #{scfa_forward.1} parent=83 // pred_region
        %p1569 = scmp.lt.s32.totalorder %s27, 1
        %s1570 = scalar_select %p1569, %s27, 1
        %s1571 = smul.addr %s1570, 2
        %s1572 = smul.addr %s1571, 8
        %s1573 = scalar_lea.vmem %s13, %s1572
      $region88: #{scfa_forward.1} parent=83 // pred_fallthru
        _
      // Predicated region
      $region89: #{scfa_forward.1} parent=83 // pred_check
        %p1574 = pneg %p359
      $region90: #{scfa_forward.1} parent=83 // pred_check_branch
        %1576 = sbr.rel (%p1574) target = $region92
      $region91: #{scfa_forward.1} parent=83 // pred_region
        %p1577 = scmp.lt.s32.totalorder %s27, 1
        %s1578 = scalar_select %p1577, %s27, 1
        %s1579 = smul.addr %s1578, 2
        %s1580 = smul.addr %s1579, 8
        %s1581 = scalar_lea.vmem %s14, %s1580
      $region92: #{scfa_forward.1} parent=83 // pred_fallthru
        _
    $region84: #{scfa_forward.1} parent=5 // pred_fallthru
      _
  $region6: #{scfa_forward.1} parent=0 // loop_footer
    %s25 = sadd.s32 1, %s21
  $region7: #{scfa_forward.1} parent=0 // loop_footer_branch
    %20 = sbr.rel target = $region3
  $region8: #{scfa_forward.1} parent=0 // loop_exit
    _

</llo_original>
